<compile_context>
chip_gen: v6e
topology: v6e:2x2x1
jax: 0.10.0
libtpu: 0.0.40
codegen_flags: <defaults>
</compile_context>

<pallas_src>
import jax
import jax.numpy as jnp
from jax.experimental import pallas as pl
from jax.experimental.pallas import tpu as pltpu

EPS = 1e-5


def _make_kernel(C, eps):
    """Builds the kernel; C (channels) and eps are closed-over Python constants."""

    def kernel(x_ref,
               a1m_ref, a10_ref, a1p_ref, b1_ref, g1_ref, be1_ref, s1_ref,
               a2m_ref, a20_ref, a2p_ref, b2_ref, g2_ref, be2_ref, s2_ref,
               a3_ref, b3_ref, out_ref):
        H, L = x_ref.shape
        inv_count = 1.0 / float(H * (L // C))          # 1 / (N*H*W)

        def conv_bn_prelu(h, A_m, A_0, A_p, b_t, g_t, be_t, slope):
            # 3x3 conv: kx taps + channel mix folded into the (L, L) banded
            # matrices; ky taps handled with two zero-filled row shifts.
            t0 = jnp.dot(h, A_0, preferred_element_type=jnp.float32)
            tm = jnp.dot(h, A_m, preferred_element_type=jnp.float32)  # row r -> out r+1
            tp = jnp.dot(h, A_p, preferred_element_type=jnp.float32)  # row r -> out r-1
            zrow = jnp.zeros_like(t0[:1])
            y = (t0 + b_t
                 + jnp.concatenate([zrow, tm[:-1]], axis=0)
                 + jnp.concatenate([tp[1:], zrow], axis=0))

            # Training-mode BatchNorm2d, single pass (sum & sum-of-squares).
            s = jnp.sum(y, axis=0, keepdims=True)       # (1, L) per-lane sums
            sq = jnp.sum(y * y, axis=0, keepdims=True)
            # Lane roll-tree: lanes are grouped (..., x, channel) with period C,
            # so log2(L/C) roll-adds leave every lane holding its channel total
            # broadcast across all lanes of that channel (XLU slot, near-free).
            shift = C
            while shift < L:
                s = s + pltpu.roll(s, shift, axis=1)
                sq = sq + pltpu.roll(sq, shift, axis=1)
                shift *= 2
            mean = s * inv_count
            var = jnp.maximum(sq * inv_count - mean * mean, 0.0)   # biased var
            inv_std = jax.lax.rsqrt(var + eps)
            yn = (y - mean) * (inv_std * g_t) + be_t
            return jnp.where(yn > 0, yn, slope * yn)    # PReLU (scalar slope)

        x = x_ref[...]
        h1 = conv_bn_prelu(x, a1m_ref[...], a10_ref[...], a1p_ref[...],
                           b1_ref[...], g1_ref[...], be1_ref[...], s1_ref[0])
        h2 = conv_bn_prelu(h1, a2m_ref[...], a20_ref[...], a2p_ref[...],
                           b2_ref[...], g2_ref[...], be2_ref[...], s2_ref[0])
        skip = jnp.dot(x, a3_ref[...], preferred_element_type=jnp.float32) + b3_ref[...]
        out_ref[...] = skip + h2

    return kernel


def residual_block_forward(x_nchw, p):
    N, C, H, W = x_nchw.shape
    L = N * W * C
    G = N * W
    assert G & (G - 1) == 0, "N*W must be a power of two for the lane reduction tree"

    x = x_nchw.astype(jnp.float32)
    # NCHW -> (H, N*W*C) lane-dense slab (boundary relayout required by the NCHW contract).
    x_slab = jnp.transpose(x, (2, 0, 3, 1)).reshape(H, L)

    def band(w, ky):
        # (L, L) banded conv matrix for kernel row ky:
        # A[(n, x_in, ci), (n', x_out, co)] = w[co, ci, ky, x_in - x_out + 1]
        # for |x_in - x_out| <= 1 and n == n'; x zero-padding is implicit.
        a = jnp.zeros((W * C, W * C), jnp.float32)
        for e in (-1, 0, 1):
            a = a + jnp.kron(jnp.eye(W, k=-e, dtype=jnp.float32),
                             jnp.transpose(w[:, :, ky, e + 1]))
        return jnp.kron(jnp.eye(N, dtype=jnp.float32), a)

    def lanes(v):
        # per-channel vector -> (1, L) lane vector aligned with the slab layout
        return jnp.tile(v.astype(jnp.float32), G).reshape(1, L)

    a_skip = jnp.kron(jnp.eye(G, dtype=jnp.float32),
                      jnp.transpose(p['w3'][:, :, 0, 0]))

    operands = (
        x_slab,
        band(p['w1'], 0), band(p['w1'], 1), band(p['w1'], 2),
        lanes(p['b1']), lanes(p['g1']), lanes(p['be1']),
        jnp.reshape(p['a1'], (1,)).astype(jnp.float32),
        band(p['w2'], 0), band(p['w2'], 1), band(p['w2'], 2),
        lanes(p['b2']), lanes(p['g2']), lanes(p['be2']),
        jnp.reshape(p['a2'], (1,)).astype(jnp.float32),
        a_skip, lanes(p['b3']),
    )

    vmem = pl.BlockSpec(memory_space=pltpu.MemorySpace.VMEM)
    smem = pl.BlockSpec(memory_space=pltpu.MemorySpace.SMEM)
    in_specs = [vmem] * 7 + [smem] + [vmem] * 6 + [smem] + [vmem] * 2

    out_slab = pl.pallas_call(
        _make_kernel(C, EPS),
        out_shape=jax.ShapeDtypeStruct((H, L), jnp.float32),
        in_specs=in_specs,
        out_specs=vmem,
        compiler_params=pltpu.CompilerParams(vmem_limit_bytes=32 * 1024 * 1024),
    )(*operands)

    # (H, N*W*C) -> NCHW
    return jnp.transpose(out_slab.reshape(H, N, W, C), (1, 3, 0, 2))


def init_params(key, C):
    ks = jax.random.split(key, 10)
    p = {}
    p['w1'] = 0.1 * jax.random.normal(ks[0], (C, C, 3, 3), jnp.float32)
    p['b1'] = 0.1 * jax.random.normal(ks[1], (C,), jnp.float32)
    p['g1'] = 1.0 + 0.1 * jax.random.normal(ks[2], (C,), jnp.float32)
    p['be1'] = 0.1 * jax.random.normal(ks[3], (C,), jnp.float32)
    p['a1'] = jnp.float32(0.25)                      # PReLU default init
    p['w2'] = 0.1 * jax.random.normal(ks[4], (C, C, 3, 3), jnp.float32)
    p['b2'] = 0.1 * jax.random.normal(ks[5], (C,), jnp.float32)
    p['g2'] = 1.0 + 0.1 * jax.random.normal(ks[6], (C,), jnp.float32)
    p['be2'] = 0.1 * jax.random.normal(ks[7], (C,), jnp.float32)
    p['a2'] = jnp.float32(0.25)
    p['w3'] = 0.1 * jax.random.normal(ks[8], (C, C, 1, 1), jnp.float32)
    p['b3'] = 0.1 * jax.random.normal(ks[9], (C,), jnp.float32)
    return p


def reference(x_nchw, p):
    """Pure-JAX reference matching the PyTorch module forward (training-mode BN)."""
    x = jnp.transpose(x_nchw, (0, 2, 3, 1)).astype(jnp.float32)

    def conv3x3(h, w, b):
        return jax.lax.conv_general_dilated(
            h, jnp.transpose(w, (2, 3, 1, 0)), (1, 1), 'SAME',
            dimension_numbers=('NHWC', 'HWIO', 'NHWC'),
            precision=jax.lax.Precision.HIGHEST) + b

    def bn_prelu(h, g, be, a):
        mean = jnp.mean(h, axis=(0, 1, 2), keepdims=True)
        var = jnp.mean((h - mean) ** 2, axis=(0, 1, 2), keepdims=True)
        hn = (h - mean) / jnp.sqrt(var + EPS) * g + be
        return jnp.where(hn > 0, hn, a * hn)

    h = bn_prelu(conv3x3(x, p['w1'], p['b1']), p['g1'], p['be1'], p['a1'])
    h = bn_prelu(conv3x3(h, p['w2'], p['b2']), p['g2'], p['be2'], p['a2'])
    skip = jnp.einsum('nhwc,oc->nhwo', x, p['w3'][:, :, 0, 0],
                      precision=jax.lax.Precision.HIGHEST) + p['b3']
    return jnp.transpose(skip + h, (0, 3, 1, 2))


if __name__ == "__main__":
    N, C, H, W = 2, 4, 16, 16
    x = jax.random.normal(jax.random.PRNGKey(0), (N, C, H, W), jnp.float32)
    params = init_params(jax.random.PRNGKey(1), C)

    fwd = jax.jit(residual_block_forward)
    y = fwd(x, params)
    jax.block_until_ready(y)

    assert y.shape == (N, C, H, W), y.shape
    y_ref = reference(x, params)
    max_err = float(jnp.max(jnp.abs(y - y_ref)))
    assert max_err < 5e-3, f"max abs error too large: {max_err}"

    print("KERNEL_OK")
</pallas_src>

<mosaic_0001>
module attributes {stable_mosaic.version = 11 : i64} {
  func.func @kernel(%arg0: memref<16x128xf32, #tpu.memory_space<vmem>>, %arg1: memref<128x128xf32, #tpu.memory_space<vmem>>, %arg2: memref<128x128xf32, #tpu.memory_space<vmem>>, %arg3: memref<128x128xf32, #tpu.memory_space<vmem>>, %arg4: memref<1x128xf32, #tpu.memory_space<vmem>>, %arg5: memref<1x128xf32, #tpu.memory_space<vmem>>, %arg6: memref<1x128xf32, #tpu.memory_space<vmem>>, %arg7: memref<1xf32, #tpu.memory_space<smem>>, %arg8: memref<128x128xf32, #tpu.memory_space<vmem>>, %arg9: memref<128x128xf32, #tpu.memory_space<vmem>>, %arg10: memref<128x128xf32, #tpu.memory_space<vmem>>, %arg11: memref<1x128xf32, #tpu.memory_space<vmem>>, %arg12: memref<1x128xf32, #tpu.memory_space<vmem>>, %arg13: memref<1x128xf32, #tpu.memory_space<vmem>>, %arg14: memref<1xf32, #tpu.memory_space<smem>>, %arg15: memref<128x128xf32, #tpu.memory_space<vmem>>, %arg16: memref<1x128xf32, #tpu.memory_space<vmem>>, %arg17: memref<16x128xf32, #tpu.memory_space<vmem>>) attributes {dimension_semantics = [], scalar_prefetch = 0 : i64, scratch_operands = 0 : i64, tpu.core_type = #tpu.core_type<tc>} {
    %c0 = arith.constant 0 : index
    %c0_0 = arith.constant 0 : index
    %0 = vector.load %arg0[%c0, %c0_0] : memref<16x128xf32, #tpu.memory_space<vmem>>, vector<16x128xf32>
    %c0_1 = arith.constant 0 : index
    %c0_2 = arith.constant 0 : index
    %1 = vector.load %arg1[%c0_1, %c0_2] : memref<128x128xf32, #tpu.memory_space<vmem>>, vector<128x128xf32>
    %c0_3 = arith.constant 0 : index
    %c0_4 = arith.constant 0 : index
    %2 = vector.load %arg2[%c0_3, %c0_4] : memref<128x128xf32, #tpu.memory_space<vmem>>, vector<128x128xf32>
    %c0_5 = arith.constant 0 : index
    %c0_6 = arith.constant 0 : index
    %3 = vector.load %arg3[%c0_5, %c0_6] : memref<128x128xf32, #tpu.memory_space<vmem>>, vector<128x128xf32>
    %c0_7 = arith.constant 0 : index
    %c0_8 = arith.constant 0 : index
    %4 = vector.load %arg4[%c0_7, %c0_8] : memref<1x128xf32, #tpu.memory_space<vmem>>, vector<1x128xf32>
    %c0_9 = arith.constant 0 : index
    %c0_10 = arith.constant 0 : index
    %5 = vector.load %arg5[%c0_9, %c0_10] : memref<1x128xf32, #tpu.memory_space<vmem>>, vector<1x128xf32>
    %c0_11 = arith.constant 0 : index
    %c0_12 = arith.constant 0 : index
    %6 = vector.load %arg6[%c0_11, %c0_12] : memref<1x128xf32, #tpu.memory_space<vmem>>, vector<1x128xf32>
    %c0_13 = arith.constant 0 : index
    %7 = memref.load %arg7[%c0_13] : memref<1xf32, #tpu.memory_space<smem>>
    %cst = arith.constant dense<0.000000e+00> : vector<16x128xf32>
    %8 = tpu.matmul %0, %2, %cst {dimension_numbers = #tpu.dot_dimension_numbers<[1], [0], [0], [1], [0, 0, 1, 1], [], []>} : vector<16x128xf32>, vector<128x128xf32>, vector<16x128xf32> -> vector<16x128xf32>
    %cst_14 = arith.constant dense<0.000000e+00> : vector<16x128xf32>
    %9 = tpu.matmul %0, %1, %cst_14 {dimension_numbers = #tpu.dot_dimension_numbers<[1], [0], [0], [1], [0, 0, 1, 1], [], []>} : vector<16x128xf32>, vector<128x128xf32>, vector<16x128xf32> -> vector<16x128xf32>
    %cst_15 = arith.constant dense<0.000000e+00> : vector<16x128xf32>
    %10 = tpu.matmul %0, %3, %cst_15 {dimension_numbers = #tpu.dot_dimension_numbers<[1], [0], [0], [1], [0, 0, 1, 1], [], []>} : vector<16x128xf32>, vector<128x128xf32>, vector<16x128xf32> -> vector<16x128xf32>
    %cst_16 = arith.constant 0.000000e+00 : f32
    %11 = vector.broadcast %cst_16 : f32 to vector<1x128xf32>
    %12 = vector.broadcast %4 : vector<1x128xf32> to vector<16x128xf32>
    %13 = arith.addf %8, %12 : vector<16x128xf32>
    %14 = vector.extract_strided_slice %9 {offsets = [0, 0], sizes = [15, 128], strides = [1, 1]} : vector<16x128xf32> to vector<15x128xf32>
    %15 = tpu.concatenate %11, %14 in 0 : vector<1x128xf32>, vector<15x128xf32> -> vector<16x128xf32>
    %16 = arith.addf %13, %15 : vector<16x128xf32>
    %17 = vector.extract_strided_slice %10 {offsets = [1, 0], sizes = [15, 128], strides = [1, 1]} : vector<16x128xf32> to vector<15x128xf32>
    %18 = tpu.concatenate %17, %11 in 0 : vector<15x128xf32>, vector<1x128xf32> -> vector<16x128xf32>
    %19 = arith.addf %16, %18 : vector<16x128xf32>
    %cst_17 = arith.constant dense<0.000000e+00> : vector<128xf32>
    %20 = vector.multi_reduction <add>, %19, %cst_17 [0] : vector<16x128xf32> to vector<128xf32>
    %21 = vector.shape_cast %20 : vector<128xf32> to vector<1x128xf32>
    %22 = arith.mulf %19, %19 : vector<16x128xf32>
    %cst_18 = arith.constant dense<0.000000e+00> : vector<128xf32>
    %23 = vector.multi_reduction <add>, %22, %cst_18 [0] : vector<16x128xf32> to vector<128xf32>
    %24 = vector.shape_cast %23 : vector<128xf32> to vector<1x128xf32>
    %c4_i32 = arith.constant 4 : i32
    %25 = tpu.dynamic_rotate %21 by %c4_i32 dim 1 : vector<1x128xf32>, i32 -> vector<1x128xf32>
    %26 = arith.addf %21, %25 : vector<1x128xf32>
    %c4_i32_19 = arith.constant 4 : i32
    %27 = tpu.dynamic_rotate %24 by %c4_i32_19 dim 1 : vector<1x128xf32>, i32 -> vector<1x128xf32>
    %28 = arith.addf %24, %27 : vector<1x128xf32>
    %c8_i32 = arith.constant 8 : i32
    %29 = tpu.dynamic_rotate %26 by %c8_i32 dim 1 : vector<1x128xf32>, i32 -> vector<1x128xf32>
    %30 = arith.addf %26, %29 : vector<1x128xf32>
    %c8_i32_20 = arith.constant 8 : i32
    %31 = tpu.dynamic_rotate %28 by %c8_i32_20 dim 1 : vector<1x128xf32>, i32 -> vector<1x128xf32>
    %32 = arith.addf %28, %31 : vector<1x128xf32>
    %c16_i32 = arith.constant 16 : i32
    %33 = tpu.dynamic_rotate %30 by %c16_i32 dim 1 : vector<1x128xf32>, i32 -> vector<1x128xf32>
    %34 = arith.addf %30, %33 : vector<1x128xf32>
    %c16_i32_21 = arith.constant 16 : i32
    %35 = tpu.dynamic_rotate %32 by %c16_i32_21 dim 1 : vector<1x128xf32>, i32 -> vector<1x128xf32>
    %36 = arith.addf %32, %35 : vector<1x128xf32>
    %c32_i32 = arith.constant 32 : i32
    %37 = tpu.dynamic_rotate %34 by %c32_i32 dim 1 : vector<1x128xf32>, i32 -> vector<1x128xf32>
    %38 = arith.addf %34, %37 : vector<1x128xf32>
    %c32_i32_22 = arith.constant 32 : i32
    %39 = tpu.dynamic_rotate %36 by %c32_i32_22 dim 1 : vector<1x128xf32>, i32 -> vector<1x128xf32>
    %40 = arith.addf %36, %39 : vector<1x128xf32>
    %c64_i32 = arith.constant 64 : i32
    %41 = tpu.dynamic_rotate %38 by %c64_i32 dim 1 : vector<1x128xf32>, i32 -> vector<1x128xf32>
    %42 = arith.addf %38, %41 : vector<1x128xf32>
    %c64_i32_23 = arith.constant 64 : i32
    %43 = tpu.dynamic_rotate %40 by %c64_i32_23 dim 1 : vector<1x128xf32>, i32 -> vector<1x128xf32>
    %44 = arith.addf %40, %43 : vector<1x128xf32>
    %cst_24 = arith.constant 0.001953125 : f32
    %45 = vector.broadcast %cst_24 : f32 to vector<1x128xf32>
    %46 = arith.mulf %42, %45 : vector<1x128xf32>
    %cst_25 = arith.constant 0.001953125 : f32
    %47 = vector.broadcast %cst_25 : f32 to vector<1x128xf32>
    %48 = arith.mulf %44, %47 : vector<1x128xf32>
    %49 = arith.mulf %46, %46 : vector<1x128xf32>
    %50 = arith.subf %48, %49 : vector<1x128xf32>
    %cst_26 = arith.constant 0.000000e+00 : f32
    %51 = vector.broadcast %cst_26 : f32 to vector<1x128xf32>
    %52 = arith.maximumf %50, %51 : vector<1x128xf32>
    %cst_27 = arith.constant 9.99999974E-6 : f32
    %53 = vector.broadcast %cst_27 : f32 to vector<1x128xf32>
    %54 = arith.addf %52, %53 : vector<1x128xf32>
    %55 = math.rsqrt %54 : vector<1x128xf32>
    %56 = vector.broadcast %46 : vector<1x128xf32> to vector<16x128xf32>
    %57 = arith.subf %19, %56 : vector<16x128xf32>
    %58 = arith.mulf %55, %5 : vector<1x128xf32>
    %59 = vector.broadcast %58 : vector<1x128xf32> to vector<16x128xf32>
    %60 = arith.mulf %57, %59 : vector<16x128xf32>
    %61 = vector.broadcast %6 : vector<1x128xf32> to vector<16x128xf32>
    %62 = arith.addf %60, %61 : vector<16x128xf32>
    %cst_28 = arith.constant 0.000000e+00 : f32
    %63 = vector.broadcast %cst_28 : f32 to vector<16x128xf32>
    %64 = arith.cmpf ogt, %62, %63 : vector<16x128xf32>
    %65 = vector.broadcast %7 : f32 to vector<16x128xf32>
    %66 = arith.mulf %65, %62 : vector<16x128xf32>
    %67 = arith.select %64, %62, %66 : vector<16x128xi1>, vector<16x128xf32>
    %c0_29 = arith.constant 0 : index
    %c0_30 = arith.constant 0 : index
    %68 = vector.load %arg8[%c0_29, %c0_30] : memref<128x128xf32, #tpu.memory_space<vmem>>, vector<128x128xf32>
    %c0_31 = arith.constant 0 : index
    %c0_32 = arith.constant 0 : index
    %69 = vector.load %arg9[%c0_31, %c0_32] : memref<128x128xf32, #tpu.memory_space<vmem>>, vector<128x128xf32>
    %c0_33 = arith.constant 0 : index
    %c0_34 = arith.constant 0 : index
    %70 = vector.load %arg10[%c0_33, %c0_34] : memref<128x128xf32, #tpu.memory_space<vmem>>, vector<128x128xf32>
    %c0_35 = arith.constant 0 : index
    %c0_36 = arith.constant 0 : index
    %71 = vector.load %arg11[%c0_35, %c0_36] : memref<1x128xf32, #tpu.memory_space<vmem>>, vector<1x128xf32>
    %c0_37 = arith.constant 0 : index
    %c0_38 = arith.constant 0 : index
    %72 = vector.load %arg12[%c0_37, %c0_38] : memref<1x128xf32, #tpu.memory_space<vmem>>, vector<1x128xf32>
    %c0_39 = arith.constant 0 : index
    %c0_40 = arith.constant 0 : index
    %73 = vector.load %arg13[%c0_39, %c0_40] : memref<1x128xf32, #tpu.memory_space<vmem>>, vector<1x128xf32>
    %c0_41 = arith.constant 0 : index
    %74 = memref.load %arg14[%c0_41] : memref<1xf32, #tpu.memory_space<smem>>
    %cst_42 = arith.constant dense<0.000000e+00> : vector<16x128xf32>
    %75 = tpu.matmul %67, %69, %cst_42 {dimension_numbers = #tpu.dot_dimension_numbers<[1], [0], [0], [1], [0, 0, 1, 1], [], []>} : vector<16x128xf32>, vector<128x128xf32>, vector<16x128xf32> -> vector<16x128xf32>
    %cst_43 = arith.constant dense<0.000000e+00> : vector<16x128xf32>
    %76 = tpu.matmul %67, %68, %cst_43 {dimension_numbers = #tpu.dot_dimension_numbers<[1], [0], [0], [1], [0, 0, 1, 1], [], []>} : vector<16x128xf32>, vector<128x128xf32>, vector<16x128xf32> -> vector<16x128xf32>
    %cst_44 = arith.constant dense<0.000000e+00> : vector<16x128xf32>
    %77 = tpu.matmul %67, %70, %cst_44 {dimension_numbers = #tpu.dot_dimension_numbers<[1], [0], [0], [1], [0, 0, 1, 1], [], []>} : vector<16x128xf32>, vector<128x128xf32>, vector<16x128xf32> -> vector<16x128xf32>
    %cst_45 = arith.constant 0.000000e+00 : f32
    %78 = vector.broadcast %cst_45 : f32 to vector<1x128xf32>
    %79 = vector.broadcast %71 : vector<1x128xf32> to vector<16x128xf32>
    %80 = arith.addf %75, %79 : vector<16x128xf32>
    %81 = vector.extract_strided_slice %76 {offsets = [0, 0], sizes = [15, 128], strides = [1, 1]} : vector<16x128xf32> to vector<15x128xf32>
    %82 = tpu.concatenate %78, %81 in 0 : vector<1x128xf32>, vector<15x128xf32> -> vector<16x128xf32>
    %83 = arith.addf %80, %82 : vector<16x128xf32>
    %84 = vector.extract_strided_slice %77 {offsets = [1, 0], sizes = [15, 128], strides = [1, 1]} : vector<16x128xf32> to vector<15x128xf32>
    %85 = tpu.concatenate %84, %78 in 0 : vector<15x128xf32>, vector<1x128xf32> -> vector<16x128xf32>
    %86 = arith.addf %83, %85 : vector<16x128xf32>
    %cst_46 = arith.constant dense<0.000000e+00> : vector<128xf32>
    %87 = vector.multi_reduction <add>, %86, %cst_46 [0] : vector<16x128xf32> to vector<128xf32>
    %88 = vector.shape_cast %87 : vector<128xf32> to vector<1x128xf32>
    %89 = arith.mulf %86, %86 : vector<16x128xf32>
    %cst_47 = arith.constant dense<0.000000e+00> : vector<128xf32>
    %90 = vector.multi_reduction <add>, %89, %cst_47 [0] : vector<16x128xf32> to vector<128xf32>
    %91 = vector.shape_cast %90 : vector<128xf32> to vector<1x128xf32>
    %c4_i32_48 = arith.constant 4 : i32
    %92 = tpu.dynamic_rotate %88 by %c4_i32_48 dim 1 : vector<1x128xf32>, i32 -> vector<1x128xf32>
    %93 = arith.addf %88, %92 : vector<1x128xf32>
    %c4_i32_49 = arith.constant 4 : i32
    %94 = tpu.dynamic_rotate %91 by %c4_i32_49 dim 1 : vector<1x128xf32>, i32 -> vector<1x128xf32>
    %95 = arith.addf %91, %94 : vector<1x128xf32>
    %c8_i32_50 = arith.constant 8 : i32
    %96 = tpu.dynamic_rotate %93 by %c8_i32_50 dim 1 : vector<1x128xf32>, i32 -> vector<1x128xf32>
    %97 = arith.addf %93, %96 : vector<1x128xf32>
    %c8_i32_51 = arith.constant 8 : i32
    %98 = tpu.dynamic_rotate %95 by %c8_i32_51 dim 1 : vector<1x128xf32>, i32 -> vector<1x128xf32>
    %99 = arith.addf %95, %98 : vector<1x128xf32>
    %c16_i32_52 = arith.constant 16 : i32
    %100 = tpu.dynamic_rotate %97 by %c16_i32_52 dim 1 : vector<1x128xf32>, i32 -> vector<1x128xf32>
    %101 = arith.addf %97, %100 : vector<1x128xf32>
    %c16_i32_53 = arith.constant 16 : i32
    %102 = tpu.dynamic_rotate %99 by %c16_i32_53 dim 1 : vector<1x128xf32>, i32 -> vector<1x128xf32>
    %103 = arith.addf %99, %102 : vector<1x128xf32>
    %c32_i32_54 = arith.constant 32 : i32
    %104 = tpu.dynamic_rotate %101 by %c32_i32_54 dim 1 : vector<1x128xf32>, i32 -> vector<1x128xf32>
    %105 = arith.addf %101, %104 : vector<1x128xf32>
    %c32_i32_55 = arith.constant 32 : i32
    %106 = tpu.dynamic_rotate %103 by %c32_i32_55 dim 1 : vector<1x128xf32>, i32 -> vector<1x128xf32>
    %107 = arith.addf %103, %106 : vector<1x128xf32>
    %c64_i32_56 = arith.constant 64 : i32
    %108 = tpu.dynamic_rotate %105 by %c64_i32_56 dim 1 : vector<1x128xf32>, i32 -> vector<1x128xf32>
    %109 = arith.addf %105, %108 : vector<1x128xf32>
    %c64_i32_57 = arith.constant 64 : i32
    %110 = tpu.dynamic_rotate %107 by %c64_i32_57 dim 1 : vector<1x128xf32>, i32 -> vector<1x128xf32>
    %111 = arith.addf %107, %110 : vector<1x128xf32>
    %cst_58 = arith.constant 0.001953125 : f32
    %112 = vector.broadcast %cst_58 : f32 to vector<1x128xf32>
    %113 = arith.mulf %109, %112 : vector<1x128xf32>
    %cst_59 = arith.constant 0.001953125 : f32
    %114 = vector.broadcast %cst_59 : f32 to vector<1x128xf32>
    %115 = arith.mulf %111, %114 : vector<1x128xf32>
    %116 = arith.mulf %113, %113 : vector<1x128xf32>
    %117 = arith.subf %115, %116 : vector<1x128xf32>
    %cst_60 = arith.constant 0.000000e+00 : f32
    %118 = vector.broadcast %cst_60 : f32 to vector<1x128xf32>
    %119 = arith.maximumf %117, %118 : vector<1x128xf32>
    %cst_61 = arith.constant 9.99999974E-6 : f32
    %120 = vector.broadcast %cst_61 : f32 to vector<1x128xf32>
    %121 = arith.addf %119, %120 : vector<1x128xf32>
    %122 = math.rsqrt %121 : vector<1x128xf32>
    %123 = vector.broadcast %113 : vector<1x128xf32> to vector<16x128xf32>
    %124 = arith.subf %86, %123 : vector<16x128xf32>
    %125 = arith.mulf %122, %72 : vector<1x128xf32>
    %126 = vector.broadcast %125 : vector<1x128xf32> to vector<16x128xf32>
    %127 = arith.mulf %124, %126 : vector<16x128xf32>
    %128 = vector.broadcast %73 : vector<1x128xf32> to vector<16x128xf32>
    %129 = arith.addf %127, %128 : vector<16x128xf32>
    %cst_62 = arith.constant 0.000000e+00 : f32
    %130 = vector.broadcast %cst_62 : f32 to vector<16x128xf32>
    %131 = arith.cmpf ogt, %129, %130 : vector<16x128xf32>
    %132 = vector.broadcast %74 : f32 to vector<16x128xf32>
    %133 = arith.mulf %132, %129 : vector<16x128xf32>
    %134 = arith.select %131, %129, %133 : vector<16x128xi1>, vector<16x128xf32>
    %c0_63 = arith.constant 0 : index
    %c0_64 = arith.constant 0 : index
    %135 = vector.load %arg15[%c0_63, %c0_64] : memref<128x128xf32, #tpu.memory_space<vmem>>, vector<128x128xf32>
    %cst_65 = arith.constant dense<0.000000e+00> : vector<16x128xf32>
    %136 = tpu.matmul %0, %135, %cst_65 {dimension_numbers = #tpu.dot_dimension_numbers<[1], [0], [0], [1], [0, 0, 1, 1], [], []>} : vector<16x128xf32>, vector<128x128xf32>, vector<16x128xf32> -> vector<16x128xf32>
    %c0_66 = arith.constant 0 : index
    %c0_67 = arith.constant 0 : index
    %137 = vector.load %arg16[%c0_66, %c0_67] : memref<1x128xf32, #tpu.memory_space<vmem>>, vector<1x128xf32>
    %138 = vector.broadcast %137 : vector<1x128xf32> to vector<16x128xf32>
    %139 = arith.addf %136, %138 : vector<16x128xf32>
    %140 = arith.addf %139, %134 : vector<16x128xf32>
    %c0_68 = arith.constant 0 : index
    %c0_69 = arith.constant 0 : index
    %141 = vector.load %arg17[%c0_68, %c0_69] : memref<16x128xf32, #tpu.memory_space<vmem>>, vector<16x128xf32>
    tpu.vector_store %arg17[%c0_68, %c0_69], %140 {strides = array<i32>} : memref<16x128xf32, #tpu.memory_space<vmem>>, vector<16x128xf32>,
    return
  }
}

</mosaic_0001>

<llo_original>
// kernel: tile.38
$region0: #{tile.38}
  #allocation0 [shape = 's32[1]{0}', space=sflag, size = 0x4, scoped, tag = 'scoped memory for tile.38']
  %s0 = inlined_call_operand.vmem [shape: f32[4], index: 0, kind: input, shape index: {}]
  %s1 = inlined_call_operand.vmem [shape: f32[32,4], index: 1, kind: output, shape index: {}]
  // Predicated region
  $region2: #{tile.38} parent=0 // pred_check
    _
  $region3: #{tile.38} parent=0 // pred_check_branch
    %3 = sbr.rel (0) target = $region5
  $region4: #{tile.38} parent=0 // pred_region
    _
  $region5: #{tile.38} parent=0 // pred_fallthru
    _
  %v4 = vld [vmem:[%s0] ss:$0 sm:$0xff]
  %5 = vst [vmem:[%s1] sm:$0xff] %v4
  %s6 = scalar_lea.vmem %s1, 8
  %7 = vst [vmem:[%s6] sm:$0xff] %v4
  %s8 = scalar_lea.vmem %s1, 16
  %9 = vst [vmem:[%s8] sm:$0xff] %v4
  %s10 = scalar_lea.vmem %s1, 24
  %11 = vst [vmem:[%s10] sm:$0xff] %v4

// kernel: tile.39
$region0: #{tile.39}
  %s0 = inlined_call_operand.vmem [shape: f32[32,4], index: 0, kind: input, shape index: {}]
  %s1 = inlined_call_operand.vmem [shape: f32[1,128], index: 1, kind: output, shape index: {}]
  $region1: #{tile.39} parent=0
    #allocation0 [shape = 'u8[4096]{0}', space=vmem, size = 0x1000, scoped, tag = 'scoped mem for output reshape']
    %v2 = vld [vmem:[%s0] sm:$0x1]
    %vm3 = vcmask 31744
    %4 = vst.msk [vmem:[#allocation0] sm:$0x1] %vm3, %v2
    %s5 = scalar_lea.vmem %s0, 31
    %v6 = vld [vmem:[%s5] sm:$0x1]
    %7 = vrot.lane.b32.xlu0 %v6, 124
    %v8 = vpop.permute.xlu0 %7
    %vm9 = vcmask 1048544
    %10 = vst.msk [vmem:[#allocation0] sm:$0x1] %vm9, %v8
    %s11 = scalar_lea.vmem %s0, 30
    %v12 = vld [vmem:[%s11] sm:$0x1]
    %13 = vrot.lane.b32.xlu0 %v12, 120
    %v14 = vpop.permute.xlu0 %13
    %vm15 = vcmask 1015744
    %16 = vst.msk [vmem:[#allocation0] sm:$0x1] %vm15, %v14
    %s17 = scalar_lea.vmem %s0, 29
    %v18 = vld [vmem:[%s17] sm:$0x1]
    %19 = vrot.lane.b32.xlu0 %v18, 116
    %v20 = vpop.permute.xlu0 %19
    %vm21 = vcmask 982944
    %22 = vst.msk [vmem:[#allocation0] sm:$0x1] %vm21, %v20
    %s23 = scalar_lea.vmem %s0, 28
    %v24 = vld [vmem:[%s23] sm:$0x1]
    %25 = vrot.lane.b32.xlu0 %v24, 112
    %v26 = vpop.permute.xlu0 %25
    %vm27 = vcmask 950144
    %28 = vst.msk [vmem:[#allocation0] sm:$0x1] %vm27, %v26
    %s29 = scalar_lea.vmem %s0, 27
    %v30 = vld [vmem:[%s29] sm:$0x1]
    %31 = vrot.lane.b32.xlu0 %v30, 108
    %v32 = vpop.permute.xlu0 %31
    %vm33 = vcmask 917344
    %34 = vst.msk [vmem:[#allocation0] sm:$0x1] %vm33, %v32
    %s35 = scalar_lea.vmem %s0, 26
    %v36 = vld [vmem:[%s35] sm:$0x1]
    %37 = vrot.lane.b32.xlu0 %v36, 104
    %v38 = vpop.permute.xlu0 %37
    %vm39 = vcmask 884544
    %40 = vst.msk [vmem:[#allocation0] sm:$0x1] %vm39, %v38
    %s41 = scalar_lea.vmem %s0, 25
    %v42 = vld [vmem:[%s41] sm:$0x1]
    %43 = vrot.lane.b32.xlu0 %v42, 100
    %v44 = vpop.permute.xlu0 %43
    %vm45 = vcmask 851744
    %46 = vst.msk [vmem:[#allocation0] sm:$0x1] %vm45, %v44
    %s47 = scalar_lea.vmem %s0, 24
    %v48 = vld [vmem:[%s47] sm:$0x1]
    %49 = vrot.lane.b32.xlu0 %v48, 96
    %v50 = vpop.permute.xlu0 %49
    %vm51 = vcmask 818944
    %52 = vst.msk [vmem:[#allocation0] sm:$0x1] %vm51, %v50
    %s53 = scalar_lea.vmem %s0, 23
    %v54 = vld [vmem:[%s53] sm:$0x1]
    %55 = vrot.lane.b32.xlu0 %v54, 92
    %v56 = vpop.permute.xlu0 %55
    %vm57 = vcmask 786144
    %58 = vst.msk [vmem:[#allocation0] sm:$0x1] %vm57, %v56
    %s59 = scalar_lea.vmem %s0, 22
    %v60 = vld [vmem:[%s59] sm:$0x1]
    %61 = vrot.lane.b32.xlu0 %v60, 88
    %v62 = vpop.permute.xlu0 %61
    %vm63 = vcmask 753344
    %64 = vst.msk [vmem:[#allocation0] sm:$0x1] %vm63, %v62
    %s65 = scalar_lea.vmem %s0, 21
    %v66 = vld [vmem:[%s65] sm:$0x1]
    %67 = vrot.lane.b32.xlu0 %v66, 84
    %v68 = vpop.permute.xlu0 %67
    %vm69 = vcmask 720544
    %70 = vst.msk [vmem:[#allocation0] sm:$0x1] %vm69, %v68
    %s71 = scalar_lea.vmem %s0, 20
    %v72 = vld [vmem:[%s71] sm:$0x1]
    %73 = vrot.lane.b32.xlu0 %v72, 80
    %v74 = vpop.permute.xlu0 %73
    %vm75 = vcmask 687744
    %76 = vst.msk [vmem:[#allocation0] sm:$0x1] %vm75, %v74
    %s77 = scalar_lea.vmem %s0, 19
    %v78 = vld [vmem:[%s77] sm:$0x1]
    %79 = vrot.lane.b32.xlu0 %v78, 76
    %v80 = vpop.permute.xlu0 %79
    %vm81 = vcmask 654944
    %82 = vst.msk [vmem:[#allocation0] sm:$0x1] %vm81, %v80
    %s83 = scalar_lea.vmem %s0, 18
    %v84 = vld [vmem:[%s83] sm:$0x1]
    %85 = vrot.lane.b32.xlu0 %v84, 72
    %v86 = vpop.permute.xlu0 %85
    %vm87 = vcmask 622144
    %88 = vst.msk [vmem:[#allocation0] sm:$0x1] %vm87, %v86
    %s89 = scalar_lea.vmem %s0, 17
    %v90 = vld [vmem:[%s89] sm:$0x1]
    %91 = vrot.lane.b32.xlu0 %v90, 68
    %v92 = vpop.permute.xlu0 %91
    %vm93 = vcmask 589344
    %94 = vst.msk [vmem:[#allocation0] sm:$0x1] %vm93, %v92
    %s95 = scalar_lea.vmem %s0, 16
    %v96 = vld [vmem:[%s95] sm:$0x1]
    %97 = vrot.lane.b32.xlu0 %v96, 64
    %v98 = vpop.permute.xlu0 %97
    %vm99 = vcmask 556544
    %100 = vst.msk [vmem:[#allocation0] sm:$0x1] %vm99, %v98
    %s101 = scalar_lea.vmem %s0, 15
    %v102 = vld [vmem:[%s101] sm:$0x1]
    %103 = vrot.lane.b32.xlu0 %v102, 60
    %v104 = vpop.permute.xlu0 %103
    %vm105 = vcmask 523744
    %106 = vst.msk [vmem:[#allocation0] sm:$0x1] %vm105, %v104
    %s107 = scalar_lea.vmem %s0, 14
    %v108 = vld [vmem:[%s107] sm:$0x1]
    %109 = vrot.lane.b32.xlu0 %v108, 56
    %v110 = vpop.permute.xlu0 %109
    %vm111 = vcmask 490944
    %112 = vst.msk [vmem:[#allocation0] sm:$0x1] %vm111, %v110
    %s113 = scalar_lea.vmem %s0, 13
    %v114 = vld [vmem:[%s113] sm:$0x1]
    %115 = vrot.lane.b32.xlu0 %v114, 52
    %v116 = vpop.permute.xlu0 %115
    %vm117 = vcmask 458144
    %118 = vst.msk [vmem:[#allocation0] sm:$0x1] %vm117, %v116
    %s119 = scalar_lea.vmem %s0, 12
    %v120 = vld [vmem:[%s119] sm:$0x1]
    %121 = vrot.lane.b32.xlu0 %v120, 48
    %v122 = vpop.permute.xlu0 %121
    %vm123 = vcmask 425344
    %124 = vst.msk [vmem:[#allocation0] sm:$0x1] %vm123, %v122
    %s125 = scalar_lea.vmem %s0, 11
    %v126 = vld [vmem:[%s125] sm:$0x1]
    %127 = vrot.lane.b32.xlu0 %v126, 44
    %v128 = vpop.permute.xlu0 %127
    %vm129 = vcmask 392544
    %130 = vst.msk [vmem:[#allocation0] sm:$0x1] %vm129, %v128
    %s131 = scalar_lea.vmem %s0, 10
    %v132 = vld [vmem:[%s131] sm:$0x1]
    %133 = vrot.lane.b32.xlu0 %v132, 40
    %v134 = vpop.permute.xlu0 %133
    %vm135 = vcmask 359744
    %136 = vst.msk [vmem:[#allocation0] sm:$0x1] %vm135, %v134
    %s137 = scalar_lea.vmem %s0, 9
    %v138 = vld [vmem:[%s137] sm:$0x1]
    %139 = vrot.lane.b32.xlu0 %v138, 36
    %v140 = vpop.permute.xlu0 %139
    %vm141 = vcmask 326944
    %142 = vst.msk [vmem:[#allocation0] sm:$0x1] %vm141, %v140
    %s143 = scalar_lea.vmem %s0, 8
    %v144 = vld [vmem:[%s143] sm:$0x1]
    %145 = vrot.lane.b32.xlu0 %v144, 32
    %v146 = vpop.permute.xlu0 %145
    %vm147 = vcmask 294144
    %148 = vst.msk [vmem:[#allocation0] sm:$0x1] %vm147, %v146
    %s149 = scalar_lea.vmem %s0, 7
    %v150 = vld [vmem:[%s149] sm:$0x1]
    %151 = vrot.lane.b32.xlu0 %v150, 28
    %v152 = vpop.permute.xlu0 %151
    %vm153 = vcmask 261344
    %154 = vst.msk [vmem:[#allocation0] sm:$0x1] %vm153, %v152
    %s155 = scalar_lea.vmem %s0, 6
    %v156 = vld [vmem:[%s155] sm:$0x1]
    %157 = vrot.lane.b32.xlu0 %v156, 24
    %v158 = vpop.permute.xlu0 %157
    %vm159 = vcmask 228544
    %160 = vst.msk [vmem:[#allocation0] sm:$0x1] %vm159, %v158
    %s161 = scalar_lea.vmem %s0, 5
    %v162 = vld [vmem:[%s161] sm:$0x1]
    %163 = vrot.lane.b32.xlu0 %v162, 20
    %v164 = vpop.permute.xlu0 %163
    %vm165 = vcmask 195744
    %166 = vst.msk [vmem:[#allocation0] sm:$0x1] %vm165, %v164
    %s167 = scalar_lea.vmem %s0, 4
    %v168 = vld [vmem:[%s167] sm:$0x1]
    %169 = vrot.lane.b32.xlu0 %v168, 16
    %v170 = vpop.permute.xlu0 %169
    %vm171 = vcmask 162944
    %172 = vst.msk [vmem:[#allocation0] sm:$0x1] %vm171, %v170
    %s173 = scalar_lea.vmem %s0, 3
    %v174 = vld [vmem:[%s173] sm:$0x1]
    %175 = vrot.lane.b32.xlu0 %v174, 12
    %v176 = vpop.permute.xlu0 %175
    %vm177 = vcmask 130144
    %178 = vst.msk [vmem:[#allocation0] sm:$0x1] %vm177, %v176
    %s179 = scalar_lea.vmem %s0, 2
    %v180 = vld [vmem:[%s179] sm:$0x1]
    %181 = vrot.lane.b32.xlu0 %v180, 8
    %v182 = vpop.permute.xlu0 %181
    %vm183 = vcmask 97344
    %184 = vst.msk [vmem:[#allocation0] sm:$0x1] %vm183, %v182
    %s185 = scalar_lea.vmem %s0, 1
    %v186 = vld [vmem:[%s185] sm:$0x1]
    %187 = vrot.lane.b32.xlu0 %v186, 4
    %v188 = vpop.permute.xlu0 %187
    %vm189 = vcmask 64544
    %190 = vst.msk [vmem:[#allocation0] sm:$0x1] %vm189, %v188
    %s192 = sshll.u32 1, 1
    %s193 = ssub.s32 %s192, 1
    %v195 = vld [vmem:[#allocation0] sm:%s193]
    %s196 = sshll.u32 1, 1
    %s197 = ssub.s32 %s196, 1
    %198 = vst [vmem:[%s1] sm:%s197] %v195

// kernel: residual_block_forward.1
$region0: #{residual_block_forward.1}
  #allocation0 [shape = 'u32[]', space=smem, size = 0x4, offset = 0x4, fixed_abs, tag = 'smem constant byte address 0x4 - core index']
  #allocation1 [shape = 'u32[144,128]{1,0:T(1,128)}', space=vmem, size = 0x12000, scoped, tag = 'internal scratch']
  #allocation2 [shape = 'f32[1]{0:T(128)S(6)}', space=smem, size = 0x200, scoped, tag = 'scoped memory for residual_block_forward.1']
  #allocation3 [shape = 'f32[1]{0:T(128)S(6)}', space=smem, size = 0x200, scoped, tag = 'scoped memory for residual_block_forward.1']
  %s0 = inlined_call_operand.vmem [shape: f32[16,128], index: 0, kind: input, shape index: {}]
  %s1 = inlined_call_operand.vmem [shape: f32[128,128], index: 1, kind: input, shape index: {}]
  %s2 = inlined_call_operand.vmem [shape: f32[128,128], index: 2, kind: input, shape index: {}]
  %s3 = inlined_call_operand.vmem [shape: f32[128,128], index: 3, kind: input, shape index: {}]
  %s4 = inlined_call_operand.vmem [shape: f32[1,128], index: 4, kind: input, shape index: {}]
  %s5 = inlined_call_operand.vmem [shape: f32[1,128], index: 5, kind: input, shape index: {}]
  %s6 = inlined_call_operand.vmem [shape: f32[1,128], index: 6, kind: input, shape index: {}]
  %s7 = inlined_call_operand.<no memory space> [shape: f32[1], index: 7, kind: input, shape index: {}]
  %s8 = inlined_call_operand.vmem [shape: f32[128,128], index: 8, kind: input, shape index: {}]
  %s9 = inlined_call_operand.vmem [shape: f32[128,128], index: 9, kind: input, shape index: {}]
  %s10 = inlined_call_operand.vmem [shape: f32[128,128], index: 10, kind: input, shape index: {}]
  %s11 = inlined_call_operand.vmem [shape: f32[1,128], index: 11, kind: input, shape index: {}]
  %s12 = inlined_call_operand.vmem [shape: f32[1,128], index: 12, kind: input, shape index: {}]
  %s13 = inlined_call_operand.vmem [shape: f32[1,128], index: 13, kind: input, shape index: {}]
  %s14 = inlined_call_operand.<no memory space> [shape: f32[1], index: 14, kind: input, shape index: {}]
  %s15 = inlined_call_operand.vmem [shape: f32[128,128], index: 15, kind: input, shape index: {}]
  %s16 = inlined_call_operand.vmem [shape: f32[1,128], index: 16, kind: input, shape index: {}]
  %s17 = inlined_call_operand.vmem [shape: f32[16,128], index: 17, kind: output, shape index: {}]
  %s18 = sld [smem:[#allocation0]]
  $region78: #{residual_block_forward.1} parent=0
    _
  %s20 = ssub.s32 1, %s18
  %s21 = scalar_select 0, %s20, %s18
  %22 = sst [smem:[#allocation2]] %s7
  %23 = sst [smem:[#allocation3]] %s14
  // Predicated region
  $region2: #{residual_block_forward.1} parent=0 // pred_check
    _
  $region3: #{residual_block_forward.1} parent=0 // pred_check_branch
    %25 = sbr.rel (0) target = $region5
  $region4: #{residual_block_forward.1} parent=0 // pred_region
    _
  $region5: #{residual_block_forward.1} parent=0 // pred_fallthru
    _
  // Predicated region
  $region6: #{residual_block_forward.1} parent=0 // pred_check
    _
  $region7: #{residual_block_forward.1} parent=0 // pred_check_branch
    %27 = sbr.rel (0) target = $region9
  $region8: #{residual_block_forward.1} parent=0 // pred_region
    _
  $region9: #{residual_block_forward.1} parent=0 // pred_fallthru
    _
  // Predicated region
  $region10: #{residual_block_forward.1} parent=0 // pred_check
    _
  $region11: #{residual_block_forward.1} parent=0 // pred_check_branch
    %29 = sbr.rel (0) target = $region13
  $region12: #{residual_block_forward.1} parent=0 // pred_region
    _
  $region13: #{residual_block_forward.1} parent=0 // pred_fallthru
    _
  // Predicated region
  $region14: #{residual_block_forward.1} parent=0 // pred_check
    _
  $region15: #{residual_block_forward.1} parent=0 // pred_check_branch
    %31 = sbr.rel (0) target = $region17
  $region16: #{residual_block_forward.1} parent=0 // pred_region
    _
  $region17: #{residual_block_forward.1} parent=0 // pred_fallthru
    _
  // Predicated region
  $region18: #{residual_block_forward.1} parent=0 // pred_check
    _
  $region19: #{residual_block_forward.1} parent=0 // pred_check_branch
    %33 = sbr.rel (0) target = $region21
  $region20: #{residual_block_forward.1} parent=0 // pred_region
    _
  $region21: #{residual_block_forward.1} parent=0 // pred_fallthru
    _
  // Predicated region
  $region22: #{residual_block_forward.1} parent=0 // pred_check
    _
  $region23: #{residual_block_forward.1} parent=0 // pred_check_branch
    %35 = sbr.rel (0) target = $region25
  $region24: #{residual_block_forward.1} parent=0 // pred_region
    _
  $region25: #{residual_block_forward.1} parent=0 // pred_fallthru
    _
  // Predicated region
  $region26: #{residual_block_forward.1} parent=0 // pred_check
    _
  $region27: #{residual_block_forward.1} parent=0 // pred_check_branch
    %37 = sbr.rel (0) target = $region29
  $region28: #{residual_block_forward.1} parent=0 // pred_region
    _
  $region29: #{residual_block_forward.1} parent=0 // pred_fallthru
    _
  // Predicated region
  $region30: #{residual_block_forward.1} parent=0 // pred_check
    _
  $region31: #{residual_block_forward.1} parent=0 // pred_check_branch
    %39 = sbr.rel (0) target = $region33
  $region32: #{residual_block_forward.1} parent=0 // pred_region
    _
  $region33: #{residual_block_forward.1} parent=0 // pred_fallthru
    _
  // Predicated region
  $region34: #{residual_block_forward.1} parent=0 // pred_check
    _
  $region35: #{residual_block_forward.1} parent=0 // pred_check_branch
    %41 = sbr.rel (0) target = $region37
  $region36: #{residual_block_forward.1} parent=0 // pred_region
    _
  $region37: #{residual_block_forward.1} parent=0 // pred_fallthru
    _
  // Predicated region
  $region38: #{residual_block_forward.1} parent=0 // pred_check
    _
  $region39: #{residual_block_forward.1} parent=0 // pred_check_branch
    %43 = sbr.rel (0) target = $region41
  $region40: #{residual_block_forward.1} parent=0 // pred_region
    _
  $region41: #{residual_block_forward.1} parent=0 // pred_fallthru
    _
  // Predicated region
  $region42: #{residual_block_forward.1} parent=0 // pred_check
    _
  $region43: #{residual_block_forward.1} parent=0 // pred_check_branch
    %45 = sbr.rel (0) target = $region45
  $region44: #{residual_block_forward.1} parent=0 // pred_region
    _
  $region45: #{residual_block_forward.1} parent=0 // pred_fallthru
    _
  // Predicated region
  $region46: #{residual_block_forward.1} parent=0 // pred_check
    _
  $region47: #{residual_block_forward.1} parent=0 // pred_check_branch
    %47 = sbr.rel (0) target = $region49
  $region48: #{residual_block_forward.1} parent=0 // pred_region
    _
  $region49: #{residual_block_forward.1} parent=0 // pred_fallthru
    _
  // Predicated region
  $region50: #{residual_block_forward.1} parent=0 // pred_check
    _
  $region51: #{residual_block_forward.1} parent=0 // pred_check_branch
    %49 = sbr.rel (0) target = $region53
  $region52: #{residual_block_forward.1} parent=0 // pred_region
    _
  $region53: #{residual_block_forward.1} parent=0 // pred_fallthru
    _
  // Predicated region
  $region54: #{residual_block_forward.1} parent=0 // pred_check
    _
  $region55: #{residual_block_forward.1} parent=0 // pred_check_branch
    %51 = sbr.rel (0) target = $region57
  $region56: #{residual_block_forward.1} parent=0 // pred_region
    _
  $region57: #{residual_block_forward.1} parent=0 // pred_fallthru
    _
  // Predicated region
  $region58: #{residual_block_forward.1} parent=0 // pred_check
    _
  $region59: #{residual_block_forward.1} parent=0 // pred_check_branch
    %53 = sbr.rel (0) target = $region61
  $region60: #{residual_block_forward.1} parent=0 // pred_region
    _
  $region61: #{residual_block_forward.1} parent=0 // pred_fallthru
    _
  // Predicated region
  $region62: #{residual_block_forward.1} parent=0 // pred_check
    _
  $region63: #{residual_block_forward.1} parent=0 // pred_check_branch
    %55 = sbr.rel (0) target = $region65
  $region64: #{residual_block_forward.1} parent=0 // pred_region
    _
  $region65: #{residual_block_forward.1} parent=0 // pred_fallthru
    _
  // Predicated region
  $region66: #{residual_block_forward.1} parent=0 // pred_check
    _
  $region67: #{residual_block_forward.1} parent=0 // pred_check_branch
    %57 = sbr.rel (0) target = $region69
  $region68: #{residual_block_forward.1} parent=0 // pred_region
    _
  $region69: #{residual_block_forward.1} parent=0 // pred_fallthru
    _
  %v58 = vld [vmem:[%s0] sm:$0xff]
  %v59 = vld [vmem:[%s0 + $0x8] sm:$0xff]
  %v60 = vld [vmem:[%s1] sm:$0xff]
  %v61 = vld [vmem:[%s1 + $0x8] sm:$0xff]
  %v62 = vld [vmem:[%s1 + $0x10] sm:$0xff]
  %v63 = vld [vmem:[%s1 + $0x18] sm:$0xff]
  %v64 = vld [vmem:[%s1 + $0x20] sm:$0xff]
  %v65 = vld [vmem:[%s1 + $0x28] sm:$0xff]
  %v66 = vld [vmem:[%s1 + $0x30] sm:$0xff]
  %v67 = vld [vmem:[%s1 + $0x38] sm:$0xff]
  %v68 = vld [vmem:[%s1 + $0x40] sm:$0xff]
  %v69 = vld [vmem:[%s1 + $0x48] sm:$0xff]
  %v70 = vld [vmem:[%s1 + $0x50] sm:$0xff]
  %v71 = vld [vmem:[%s1 + $0x58] sm:$0xff]
  %v72 = vld [vmem:[%s1 + $0x60] sm:$0xff]
  %v73 = vld [vmem:[%s1 + $0x68] sm:$0xff]
  %v74 = vld [vmem:[%s1 + $0x70] sm:$0xff]
  %v75 = vld [vmem:[%s1 + $0x78] sm:$0xff]
  %v76 = vld [vmem:[%s2] sm:$0xff]
  %v77 = vld [vmem:[%s2 + $0x8] sm:$0xff]
  %v78 = vld [vmem:[%s2 + $0x10] sm:$0xff]
  %v79 = vld [vmem:[%s2 + $0x18] sm:$0xff]
  %v80 = vld [vmem:[%s2 + $0x20] sm:$0xff]
  %v81 = vld [vmem:[%s2 + $0x28] sm:$0xff]
  %v82 = vld [vmem:[%s2 + $0x30] sm:$0xff]
  %v83 = vld [vmem:[%s2 + $0x38] sm:$0xff]
  %v84 = vld [vmem:[%s2 + $0x40] sm:$0xff]
  %v85 = vld [vmem:[%s2 + $0x48] sm:$0xff]
  %v86 = vld [vmem:[%s2 + $0x50] sm:$0xff]
  %v87 = vld [vmem:[%s2 + $0x58] sm:$0xff]
  %v88 = vld [vmem:[%s2 + $0x60] sm:$0xff]
  %v89 = vld [vmem:[%s2 + $0x68] sm:$0xff]
  %v90 = vld [vmem:[%s2 + $0x70] sm:$0xff]
  %v91 = vld [vmem:[%s2 + $0x78] sm:$0xff]
  %v92 = vld [vmem:[%s3] sm:$0xff]
  %v93 = vld [vmem:[%s3 + $0x8] sm:$0xff]
  %v94 = vld [vmem:[%s3 + $0x10] sm:$0xff]
  %v95 = vld [vmem:[%s3 + $0x18] sm:$0xff]
  %v96 = vld [vmem:[%s3 + $0x20] sm:$0xff]
  %v97 = vld [vmem:[%s3 + $0x28] sm:$0xff]
  %v98 = vld [vmem:[%s3 + $0x30] sm:$0xff]
  %v99 = vld [vmem:[%s3 + $0x38] sm:$0xff]
  %v100 = vld [vmem:[%s3 + $0x40] sm:$0xff]
  %v101 = vld [vmem:[%s3 + $0x48] sm:$0xff]
  %v102 = vld [vmem:[%s3 + $0x50] sm:$0xff]
  %v103 = vld [vmem:[%s3 + $0x58] sm:$0xff]
  %v104 = vld [vmem:[%s3 + $0x60] sm:$0xff]
  %v105 = vld [vmem:[%s3 + $0x68] sm:$0xff]
  %v106 = vld [vmem:[%s3 + $0x70] sm:$0xff]
  %v107 = vld [vmem:[%s3 + $0x78] sm:$0xff]
  %v108 = vld [vmem:[%s4] sm:$0x1]
  %v109 = vld [vmem:[%s5] sm:$0x1]
  %v110 = vld [vmem:[%s6] sm:$0x1]
  %s111 = sld [smem:[#allocation2]]
  %112 = vmatprep.subr.mxu0 0.0
  %113 = vmatpush1.msra.mxu0 %v75
  %114 = vmatprep.subr.mxu0 0.0
  %115 = vmatpush1.msra.mxu0 %v74
  %116 = vmatprep.subr.mxu0 0.0
  %117 = vmatpush1.msra.mxu0 %v73
  %118 = vmatprep.subr.mxu0 0.0
  %119 = vmatpush1.msra.mxu0 %v72
  %120 = vmatprep.subr.mxu0 0.0
  %121 = vmatpush1.msra.mxu0 %v71
  %122 = vmatprep.subr.mxu0 0.0
  %123 = vmatpush1.msra.mxu0 %v70
  %124 = vmatprep.subr.mxu0 0.0
  %125 = vmatpush1.msra.mxu0 %v69
  %126 = vmatprep.subr.mxu0 0.0
  %127 = vmatpush1.msra.mxu0 %v68
  %128 = vmatprep.subr.mxu0 0.0
  %129 = vmatpush1.msra.mxu0 %v67
  %130 = vmatprep.subr.mxu0 0.0
  %131 = vmatpush1.msra.mxu0 %v66
  %132 = vmatprep.subr.mxu0 0.0
  %133 = vmatpush1.msra.mxu0 %v65
  %134 = vmatprep.subr.mxu0 0.0
  %135 = vmatpush1.msra.mxu0 %v64
  %136 = vmatprep.subr.mxu0 0.0
  %137 = vmatpush1.msra.mxu0 %v63
  %138 = vmatprep.subr.mxu0 0.0
  %139 = vmatpush1.msra.mxu0 %v62
  %140 = vmatprep.subr.mxu0 0.0
  %141 = vmatpush1.msra.mxu0 %v61
  %142 = vmatprep.subr.mxu0 0.0
  %143 = vmatpush1.msra.mxu0 %v60
  %144 = vmatprep.subr.mxu0 0.0
  %145 = vmatpush2.msra.mxu0 0.0
  %146 = vmatprep.subr.mxu0 0.0
  %147 = vmatpush2.msra.mxu0 0.0
  %148 = vmatprep.subr.mxu0 0.0
  %149 = vmatpush2.msra.mxu0 0.0
  %150 = vmatprep.subr.mxu0 0.0
  %151 = vmatpush2.msra.mxu0 0.0
  %152 = vmatprep.subr.mxu0 0.0
  %153 = vmatpush2.msra.mxu0 0.0
  %154 = vmatprep.subr.mxu0 0.0
  %155 = vmatpush2.msra.mxu0 0.0
  %156 = vmatprep.subr.mxu0 0.0
  %157 = vmatpush2.msra.mxu0 0.0
  %158 = vmatprep.subr.mxu0 0.0
  %159 = vmatpush2.msra.mxu0 0.0
  %160 = vmatprep.subr.mxu0 0.0
  %161 = vmatpush2.msra.mxu0 0.0
  %162 = vmatprep.subr.mxu0 0.0
  %163 = vmatpush2.msra.mxu0 0.0
  %164 = vmatprep.subr.mxu0 0.0
  %165 = vmatpush2.msra.mxu0 0.0
  %166 = vmatprep.subr.mxu0 0.0
  %167 = vmatpush2.msra.mxu0 0.0
  %168 = vmatprep.subr.mxu0 0.0
  %169 = vmatpush2.msra.mxu0 0.0
  %170 = vmatprep.subr.mxu0 0.0
  %171 = vmatpush2.msra.mxu0 0.0
  %172 = vmatprep.subr.mxu0 0.0
  %173 = vmatpush2.msra.mxu0 0.0
  %174 = vmatprep.subr.mxu0 0.0
  %175 = vmatpush2.msra.mxu0 0.0
  %176 = vmatprep.mubr.f32.mxu0 0.0
  %177 = vmatmul.mubr.f32.gmra.mxu0 %v58
  %v178 = vpop.f32.mrf.mxu0
  %v179 = vadd.f32 0.0, %v178
  %v180 = vpop.f32.mrf.mxu0
  %181 = vmatprep.mubr.f32.mxu0 0.0
  %182 = vmatmul.mubr.f32.gmra.mxu0 %v59
  %v183 = vpop.f32.mrf.mxu0
  %v184 = vadd.f32 0.0, %v183
  %v185 = vpop.f32.mrf.mxu0
  %186 = vdwg.mxu0
  %187 = vmatprep.subr.mxu0 0.0
  %188 = vmatpush1.msra.mxu0 %v107
  %189 = vmatprep.subr.mxu0 0.0
  %190 = vmatpush1.msra.mxu0 %v106
  %191 = vmatprep.subr.mxu0 0.0
  %192 = vmatpush1.msra.mxu0 %v105
  %193 = vmatprep.subr.mxu0 0.0
  %194 = vmatpush1.msra.mxu0 %v104
  %195 = vmatprep.subr.mxu0 0.0
  %196 = vmatpush1.msra.mxu0 %v103
  %197 = vmatprep.subr.mxu0 0.0
  %198 = vmatpush1.msra.mxu0 %v102
  %199 = vmatprep.subr.mxu0 0.0
  %200 = vmatpush1.msra.mxu0 %v101
  %201 = vmatprep.subr.mxu0 0.0
  %202 = vmatpush1.msra.mxu0 %v100
  %203 = vmatprep.subr.mxu0 0.0
  %204 = vmatpush1.msra.mxu0 %v99
  %205 = vmatprep.subr.mxu0 0.0
  %206 = vmatpush1.msra.mxu0 %v98
  %207 = vmatprep.subr.mxu0 0.0
  %208 = vmatpush1.msra.mxu0 %v97
  %209 = vmatprep.subr.mxu0 0.0
  %210 = vmatpush1.msra.mxu0 %v96
  %211 = vmatprep.subr.mxu0 0.0
  %212 = vmatpush1.msra.mxu0 %v95
  %213 = vmatprep.subr.mxu0 0.0
  %214 = vmatpush1.msra.mxu0 %v94
  %215 = vmatprep.subr.mxu0 0.0
  %216 = vmatpush1.msra.mxu0 %v93
  %217 = vmatprep.subr.mxu0 0.0
  %218 = vmatpush1.msra.mxu0 %v92
  %219 = vmatprep.subr.mxu0 0.0
  %220 = vmatpush2.msra.mxu0 0.0
  %221 = vmatprep.subr.mxu0 0.0
  %222 = vmatpush2.msra.mxu0 0.0
  %223 = vmatprep.subr.mxu0 0.0
  %224 = vmatpush2.msra.mxu0 0.0
  %225 = vmatprep.subr.mxu0 0.0
  %226 = vmatpush2.msra.mxu0 0.0
  %227 = vmatprep.subr.mxu0 0.0
  %228 = vmatpush2.msra.mxu0 0.0
  %229 = vmatprep.subr.mxu0 0.0
  %230 = vmatpush2.msra.mxu0 0.0
  %231 = vmatprep.subr.mxu0 0.0
  %232 = vmatpush2.msra.mxu0 0.0
  %233 = vmatprep.subr.mxu0 0.0
  %234 = vmatpush2.msra.mxu0 0.0
  %235 = vmatprep.subr.mxu0 0.0
  %236 = vmatpush2.msra.mxu0 0.0
  %237 = vmatprep.subr.mxu0 0.0
  %238 = vmatpush2.msra.mxu0 0.0
  %239 = vmatprep.subr.mxu0 0.0
  %240 = vmatpush2.msra.mxu0 0.0
  %241 = vmatprep.subr.mxu0 0.0
  %242 = vmatpush2.msra.mxu0 0.0
  %243 = vmatprep.subr.mxu0 0.0
  %244 = vmatpush2.msra.mxu0 0.0
  %245 = vmatprep.subr.mxu0 0.0
  %246 = vmatpush2.msra.mxu0 0.0
  %247 = vmatprep.subr.mxu0 0.0
  %248 = vmatpush2.msra.mxu0 0.0
  %249 = vmatprep.subr.mxu0 0.0
  %250 = vmatpush2.msra.mxu0 0.0
  %251 = vmatprep.mubr.f32.mxu0 0.0
  %252 = vmatmul.mubr.f32.gmra.mxu0 %v58
  %v253 = vpop.f32.mrf.mxu0
  %v254 = vadd.f32 0.0, %v253
  %v255 = vpop.f32.mrf.mxu0
  %256 = vmatprep.mubr.f32.mxu0 0.0
  %257 = vmatmul.mubr.f32.gmra.mxu0 %v59
  %v258 = vpop.f32.mrf.mxu0
  %v259 = vadd.f32 0.0, %v258
  %v260 = vpop.f32.mrf.mxu0
  %261 = vdwg.mxu0
  %v263 = vlaneseq
  %v264 = vshrl.u32 %v263, 7
  %v265 = vsub.s32 0, %v264
  %v266 = vrot.slane %v108, %v265
  %268 = vmatprep.subr.mxu0 0.0
  %269 = vmatpush1.msra.mxu0 %v91
  %270 = vmatprep.subr.mxu0 0.0
  %271 = vmatpush1.msra.mxu0 %v90
  %272 = vmatprep.subr.mxu0 0.0
  %273 = vmatpush1.msra.mxu0 %v89
  %274 = vmatprep.subr.mxu0 0.0
  %275 = vmatpush1.msra.mxu0 %v88
  %276 = vmatprep.subr.mxu0 0.0
  %277 = vmatpush1.msra.mxu0 %v87
  %278 = vmatprep.subr.mxu0 0.0
  %279 = vmatpush1.msra.mxu0 %v86
  %280 = vmatprep.subr.mxu0 0.0
  %281 = vmatpush1.msra.mxu0 %v85
  %282 = vmatprep.subr.mxu0 0.0
  %283 = vmatpush1.msra.mxu0 %v84
  %284 = vmatprep.subr.mxu0 0.0
  %285 = vmatpush1.msra.mxu0 %v83
  %286 = vmatprep.subr.mxu0 0.0
  %287 = vmatpush1.msra.mxu0 %v82
  %288 = vmatprep.subr.mxu0 0.0
  %289 = vmatpush1.msra.mxu0 %v81
  %290 = vmatprep.subr.mxu0 0.0
  %291 = vmatpush1.msra.mxu0 %v80
  %292 = vmatprep.subr.mxu0 0.0
  %293 = vmatpush1.msra.mxu0 %v79
  %294 = vmatprep.subr.mxu0 0.0
  %295 = vmatpush1.msra.mxu0 %v78
  %296 = vmatprep.subr.mxu0 0.0
  %297 = vmatpush1.msra.mxu0 %v77
  %298 = vmatprep.subr.mxu0 0.0
  %299 = vmatpush1.msra.mxu0 %v76
  %300 = vmatprep.subr.mxu0 0.0
  %301 = vmatpush2.msra.mxu0 0.0
  %302 = vmatprep.subr.mxu0 0.0
  %303 = vmatpush2.msra.mxu0 0.0
  %304 = vmatprep.subr.mxu0 0.0
  %305 = vmatpush2.msra.mxu0 0.0
  %306 = vmatprep.subr.mxu0 0.0
  %307 = vmatpush2.msra.mxu0 0.0
  %308 = vmatprep.subr.mxu0 0.0
  %309 = vmatpush2.msra.mxu0 0.0
  %310 = vmatprep.subr.mxu0 0.0
  %311 = vmatpush2.msra.mxu0 0.0
  %312 = vmatprep.subr.mxu0 0.0
  %313 = vmatpush2.msra.mxu0 0.0
  %314 = vmatprep.subr.mxu0 0.0
  %315 = vmatpush2.msra.mxu0 0.0
  %316 = vmatprep.subr.mxu0 0.0
  %317 = vmatpush2.msra.mxu0 0.0
  %318 = vmatprep.subr.mxu0 0.0
  %319 = vmatpush2.msra.mxu0 0.0
  %320 = vmatprep.subr.mxu0 0.0
  %321 = vmatpush2.msra.mxu0 0.0
  %322 = vmatprep.subr.mxu0 0.0
  %323 = vmatpush2.msra.mxu0 0.0
  %324 = vmatprep.subr.mxu0 0.0
  %325 = vmatpush2.msra.mxu0 0.0
  %326 = vmatprep.subr.mxu0 0.0
  %327 = vmatpush2.msra.mxu0 0.0
  %328 = vmatprep.subr.mxu0 0.0
  %329 = vmatpush2.msra.mxu0 0.0
  %330 = vmatprep.subr.mxu0 0.0
  %331 = vmatpush2.msra.mxu0 0.0
  %332 = vmatprep.mubr.f32.mxu0 0.0
  %333 = vmatmul.mubr.f32.gmra.mxu0 %v58
  %v334 = vpop.f32.mrf.mxu0
  %v335 = vadd.f32 %v266, %v334
  %v336 = vpop.f32.mrf.mxu0
  %337 = vmatprep.mubr.f32.mxu0 0.0
  %338 = vmatmul.mubr.f32.gmra.mxu0 %v59
  %v339 = vpop.f32.mrf.mxu0
  %v340 = vadd.f32 %v266, %v339
  %v341 = vpop.f32.mrf.mxu0
  %342 = vdwg.mxu0
  %vm345 = vcmask 1040384
  %v346 = vrot.slane %v179, 7
  %v347 = vrot.slane %v184, 7
  %v348 = vsel %vm345, %v346, %v347
  %v351 = vsel %vm345, 0.0, %v346
  %v352 = vadd.f32 %v335, %v351
  %v353 = vadd.f32 %v340, %v348
  %vm356 = vcmask 1046528
  %v357 = vrot.slane %v254, 1
  %v358 = vrot.slane %v259, 1
  %v359 = vsel %vm356, %v357, %v358
  %v362 = vsel %vm356, %v358, 0.0
  %v363 = vadd.f32 %v352, %v359
  %v364 = vadd.f32 %v353, %v362
  %v365 = vadd.f32 %v363, %v364
  %v366 = vrot.slane %v365, 4
  %v367 = vadd.f32 %v365, %v366
  %v368 = vrot.slane %v367, 2
  %v369 = vadd.f32 %v367, %v368
  %v370 = vrot.slane %v369, 1
  %v371 = vadd.f32 %v369, %v370
  %v372 = vmul.f32 %v363, %v363
  %v373 = vmul.f32 %v364, %v364
  %v374 = vadd.f32 %v372, %v373
  %v375 = vrot.slane %v374, 4
  %v376 = vadd.f32 %v374, %v375
  %v377 = vrot.slane %v376, 2
  %v378 = vadd.f32 %v376, %v377
  %v379 = vrot.slane %v378, 1
  %v380 = vadd.f32 %v378, %v379
  %381 = vrot.lane.b32.xlu0 %v371, 4
  %v382 = vpop.permute.xlu0 %381
  %v383 = vadd.f32 %v371, %v382
  %384 = vrot.lane.b32.xlu0 %v380, 4
  %v385 = vpop.permute.xlu0 %384
  %v386 = vadd.f32 %v380, %v385
  %387 = vrot.lane.b32.xlu0 %v383, 8
  %v388 = vpop.permute.xlu0 %387
  %v389 = vadd.f32 %v383, %v388
  %390 = vrot.lane.b32.xlu0 %v386, 8
  %v391 = vpop.permute.xlu0 %390
  %v392 = vadd.f32 %v386, %v391
  %393 = vrot.lane.b32.xlu0 %v389, 16
  %v394 = vpop.permute.xlu0 %393
  %v395 = vadd.f32 %v389, %v394
  %396 = vrot.lane.b32.xlu0 %v392, 16
  %v397 = vpop.permute.xlu0 %396
  %v398 = vadd.f32 %v392, %v397
  %399 = vrot.lane.b32.xlu0 %v395, 32
  %v400 = vpop.permute.xlu0 %399
  %v401 = vadd.f32 %v395, %v400
  %402 = vrot.lane.b32.xlu0 %v398, 32
  %v403 = vpop.permute.xlu0 %402
  %v404 = vadd.f32 %v398, %v403
  %405 = vrot.lane.b32.xlu0 %v401, 64
  %v406 = vpop.permute.xlu0 %405
  %v407 = vadd.f32 %v401, %v406
  %408 = vrot.lane.b32.xlu0 %v404, 64
  %v409 = vpop.permute.xlu0 %408
  %v410 = vadd.f32 %v404, %v409
  %v411 = vmul.f32 %v407, 0.001953125
  %v412 = vmul.f32 %v410, 0.001953125
  %v413 = vmul.f32 %v411, %v411
  %v414 = vsub.f32 %v412, %v413
  %v415 = vmax.f32 %v414, 0.0
  %v416 = vadd.f32 %v415, 1e-05
  %v417 = vrsqrt.pop %v416
  %v418 = vlaneseq
  %v419 = vshrl.u32 %v418, 7
  %v420 = vsub.s32 0, %v419
  %v421 = vrot.slane %v411, %v420
  %v422 = vsub.f32 %v363, %v421
  %v423 = vsub.f32 %v364, %v421
  %v424 = vmul.f32 %v417, %v109
  %v425 = vlaneseq
  %v426 = vshrl.u32 %v425, 7
  %v427 = vsub.s32 0, %v426
  %v428 = vrot.slane %v424, %v427
  %v429 = vmul.f32 %v422, %v428
  %v430 = vmul.f32 %v423, %v428
  %v432 = vlaneseq
  %v433 = vshrl.u32 %v432, 7
  %v434 = vsub.s32 0, %v433
  %v435 = vrot.slane %v110, %v434
  %v437 = vadd.f32 %v429, %v435
  %v438 = vadd.f32 %v430, %v435
  %vm439 = vcmp.gt.f32.partialorder %v437, 0.0
  %vm440 = vcmp.gt.f32.partialorder %v438, 0.0
  %v441 = vstv %s111
  %v442 = vmul.f32 %v441, %v437
  %v443 = vmul.f32 %v441, %v438
  %v444 = vsel %vm439, %v437, %v442
  %v445 = vsel %vm440, %v438, %v443
  %v446 = vld [vmem:[%s8] sm:$0xff]
  %v447 = vld [vmem:[%s8 + $0x8] sm:$0xff]
  %v448 = vld [vmem:[%s8 + $0x10] sm:$0xff]
  %v449 = vld [vmem:[%s8 + $0x18] sm:$0xff]
  %v450 = vld [vmem:[%s8 + $0x20] sm:$0xff]
  %v451 = vld [vmem:[%s8 + $0x28] sm:$0xff]
  %v452 = vld [vmem:[%s8 + $0x30] sm:$0xff]
  %v453 = vld [vmem:[%s8 + $0x38] sm:$0xff]
  %v454 = vld [vmem:[%s8 + $0x40] sm:$0xff]
  %v455 = vld [vmem:[%s8 + $0x48] sm:$0xff]
  %v456 = vld [vmem:[%s8 + $0x50] sm:$0xff]
  %v457 = vld [vmem:[%s8 + $0x58] sm:$0xff]
  %v458 = vld [vmem:[%s8 + $0x60] sm:$0xff]
  %v459 = vld [vmem:[%s8 + $0x68] sm:$0xff]
  %v460 = vld [vmem:[%s8 + $0x70] sm:$0xff]
  %v461 = vld [vmem:[%s8 + $0x78] sm:$0xff]
  %v462 = vld [vmem:[%s9] sm:$0xff]
  %v463 = vld [vmem:[%s9 + $0x8] sm:$0xff]
  %v464 = vld [vmem:[%s9 + $0x10] sm:$0xff]
  %v465 = vld [vmem:[%s9 + $0x18] sm:$0xff]
  %v466 = vld [vmem:[%s9 + $0x20] sm:$0xff]
  %v467 = vld [vmem:[%s9 + $0x28] sm:$0xff]
  %v468 = vld [vmem:[%s9 + $0x30] sm:$0xff]
  %v469 = vld [vmem:[%s9 + $0x38] sm:$0xff]
  %v470 = vld [vmem:[%s9 + $0x40] sm:$0xff]
  %v471 = vld [vmem:[%s9 + $0x48] sm:$0xff]
  %v472 = vld [vmem:[%s9 + $0x50] sm:$0xff]
  %v473 = vld [vmem:[%s9 + $0x58] sm:$0xff]
  %v474 = vld [vmem:[%s9 + $0x60] sm:$0xff]
  %v475 = vld [vmem:[%s9 + $0x68] sm:$0xff]
  %v476 = vld [vmem:[%s9 + $0x70] sm:$0xff]
  %v477 = vld [vmem:[%s9 + $0x78] sm:$0xff]
  %v478 = vld [vmem:[%s10] sm:$0xff]
  %v479 = vld [vmem:[%s10 + $0x8] sm:$0xff]
  %v480 = vld [vmem:[%s10 + $0x10] sm:$0xff]
  %v481 = vld [vmem:[%s10 + $0x18] sm:$0xff]
  %v482 = vld [vmem:[%s10 + $0x20] sm:$0xff]
  %v483 = vld [vmem:[%s10 + $0x28] sm:$0xff]
  %v484 = vld [vmem:[%s10 + $0x30] sm:$0xff]
  %v485 = vld [vmem:[%s10 + $0x38] sm:$0xff]
  %v486 = vld [vmem:[%s10 + $0x40] sm:$0xff]
  %v487 = vld [vmem:[%s10 + $0x48] sm:$0xff]
  %v488 = vld [vmem:[%s10 + $0x50] sm:$0xff]
  %v489 = vld [vmem:[%s10 + $0x58] sm:$0xff]
  %v490 = vld [vmem:[%s10 + $0x60] sm:$0xff]
  %v491 = vld [vmem:[%s10 + $0x68] sm:$0xff]
  %v492 = vld [vmem:[%s10 + $0x70] sm:$0xff]
  %v493 = vld [vmem:[%s10 + $0x78] sm:$0xff]
  %v494 = vld [vmem:[%s11] sm:$0x1]
  %v495 = vld [vmem:[%s12] sm:$0x1]
  %v496 = vld [vmem:[%s13] sm:$0x1]
  %s497 = sld [smem:[#allocation3]]
  %498 = vmatprep.subr.mxu0 0.0
  %499 = vmatpush1.msra.mxu0 %v461
  %500 = vmatprep.subr.mxu0 0.0
  %501 = vmatpush1.msra.mxu0 %v460
  %502 = vmatprep.subr.mxu0 0.0
  %503 = vmatpush1.msra.mxu0 %v459
  %504 = vmatprep.subr.mxu0 0.0
  %505 = vmatpush1.msra.mxu0 %v458
  %506 = vmatprep.subr.mxu0 0.0
  %507 = vmatpush1.msra.mxu0 %v457
  %508 = vmatprep.subr.mxu0 0.0
  %509 = vmatpush1.msra.mxu0 %v456
  %510 = vmatprep.subr.mxu0 0.0
  %511 = vmatpush1.msra.mxu0 %v455
  %512 = vmatprep.subr.mxu0 0.0
  %513 = vmatpush1.msra.mxu0 %v454
  %514 = vmatprep.subr.mxu0 0.0
  %515 = vmatpush1.msra.mxu0 %v453
  %516 = vmatprep.subr.mxu0 0.0
  %517 = vmatpush1.msra.mxu0 %v452
  %518 = vmatprep.subr.mxu0 0.0
  %519 = vmatpush1.msra.mxu0 %v451
  %520 = vmatprep.subr.mxu0 0.0
  %521 = vmatpush1.msra.mxu0 %v450
  %522 = vmatprep.subr.mxu0 0.0
  %523 = vmatpush1.msra.mxu0 %v449
  %524 = vmatprep.subr.mxu0 0.0
  %525 = vmatpush1.msra.mxu0 %v448
  %526 = vmatprep.subr.mxu0 0.0
  %527 = vmatpush1.msra.mxu0 %v447
  %528 = vmatprep.subr.mxu0 0.0
  %529 = vmatpush1.msra.mxu0 %v446
  %530 = vmatprep.subr.mxu0 0.0
  %531 = vmatpush2.msra.mxu0 0.0
  %532 = vmatprep.subr.mxu0 0.0
  %533 = vmatpush2.msra.mxu0 0.0
  %534 = vmatprep.subr.mxu0 0.0
  %535 = vmatpush2.msra.mxu0 0.0
  %536 = vmatprep.subr.mxu0 0.0
  %537 = vmatpush2.msra.mxu0 0.0
  %538 = vmatprep.subr.mxu0 0.0
  %539 = vmatpush2.msra.mxu0 0.0
  %540 = vmatprep.subr.mxu0 0.0
  %541 = vmatpush2.msra.mxu0 0.0
  %542 = vmatprep.subr.mxu0 0.0
  %543 = vmatpush2.msra.mxu0 0.0
  %544 = vmatprep.subr.mxu0 0.0
  %545 = vmatpush2.msra.mxu0 0.0
  %546 = vmatprep.subr.mxu0 0.0
  %547 = vmatpush2.msra.mxu0 0.0
  %548 = vmatprep.subr.mxu0 0.0
  %549 = vmatpush2.msra.mxu0 0.0
  %550 = vmatprep.subr.mxu0 0.0
  %551 = vmatpush2.msra.mxu0 0.0
  %552 = vmatprep.subr.mxu0 0.0
  %553 = vmatpush2.msra.mxu0 0.0
  %554 = vmatprep.subr.mxu0 0.0
  %555 = vmatpush2.msra.mxu0 0.0
  %556 = vmatprep.subr.mxu0 0.0
  %557 = vmatpush2.msra.mxu0 0.0
  %558 = vmatprep.subr.mxu0 0.0
  %559 = vmatpush2.msra.mxu0 0.0
  %560 = vmatprep.subr.mxu0 0.0
  %561 = vmatpush2.msra.mxu0 0.0
  %562 = vmatprep.mubr.f32.mxu0 0.0
  %563 = vmatmul.mubr.f32.gmra.mxu0 %v444
  %v564 = vpop.f32.mrf.mxu0
  %v565 = vadd.f32 0.0, %v564
  %v566 = vpop.f32.mrf.mxu0
  %567 = vmatprep.mubr.f32.mxu0 0.0
  %568 = vmatmul.mubr.f32.gmra.mxu0 %v445
  %v569 = vpop.f32.mrf.mxu0
  %v570 = vadd.f32 0.0, %v569
  %v571 = vpop.f32.mrf.mxu0
  %572 = vdwg.mxu0
  %573 = vmatprep.subr.mxu0 0.0
  %574 = vmatpush1.msra.mxu0 %v493
  %575 = vmatprep.subr.mxu0 0.0
  %576 = vmatpush1.msra.mxu0 %v492
  %577 = vmatprep.subr.mxu0 0.0
  %578 = vmatpush1.msra.mxu0 %v491
  %579 = vmatprep.subr.mxu0 0.0
  %580 = vmatpush1.msra.mxu0 %v490
  %581 = vmatprep.subr.mxu0 0.0
  %582 = vmatpush1.msra.mxu0 %v489
  %583 = vmatprep.subr.mxu0 0.0
  %584 = vmatpush1.msra.mxu0 %v488
  %585 = vmatprep.subr.mxu0 0.0
  %586 = vmatpush1.msra.mxu0 %v487
  %587 = vmatprep.subr.mxu0 0.0
  %588 = vmatpush1.msra.mxu0 %v486
  %589 = vmatprep.subr.mxu0 0.0
  %590 = vmatpush1.msra.mxu0 %v485
  %591 = vmatprep.subr.mxu0 0.0
  %592 = vmatpush1.msra.mxu0 %v484
  %593 = vmatprep.subr.mxu0 0.0
  %594 = vmatpush1.msra.mxu0 %v483
  %595 = vmatprep.subr.mxu0 0.0
  %596 = vmatpush1.msra.mxu0 %v482
  %597 = vmatprep.subr.mxu0 0.0
  %598 = vmatpush1.msra.mxu0 %v481
  %599 = vmatprep.subr.mxu0 0.0
  %600 = vmatpush1.msra.mxu0 %v480
  %601 = vmatprep.subr.mxu0 0.0
  %602 = vmatpush1.msra.mxu0 %v479
  %603 = vmatprep.subr.mxu0 0.0
  %604 = vmatpush1.msra.mxu0 %v478
  %605 = vmatprep.subr.mxu0 0.0
  %606 = vmatpush2.msra.mxu0 0.0
  %607 = vmatprep.subr.mxu0 0.0
  %608 = vmatpush2.msra.mxu0 0.0
  %609 = vmatprep.subr.mxu0 0.0
  %610 = vmatpush2.msra.mxu0 0.0
  %611 = vmatprep.subr.mxu0 0.0
  %612 = vmatpush2.msra.mxu0 0.0
  %613 = vmatprep.subr.mxu0 0.0
  %614 = vmatpush2.msra.mxu0 0.0
  %615 = vmatprep.subr.mxu0 0.0
  %616 = vmatpush2.msra.mxu0 0.0
  %617 = vmatprep.subr.mxu0 0.0
  %618 = vmatpush2.msra.mxu0 0.0
  %619 = vmatprep.subr.mxu0 0.0
  %620 = vmatpush2.msra.mxu0 0.0
  %621 = vmatprep.subr.mxu0 0.0
  %622 = vmatpush2.msra.mxu0 0.0
  %623 = vmatprep.subr.mxu0 0.0
  %624 = vmatpush2.msra.mxu0 0.0
  %625 = vmatprep.subr.mxu0 0.0
  %626 = vmatpush2.msra.mxu0 0.0
  %627 = vmatprep.subr.mxu0 0.0
  %628 = vmatpush2.msra.mxu0 0.0
  %629 = vmatprep.subr.mxu0 0.0
  %630 = vmatpush2.msra.mxu0 0.0
  %631 = vmatprep.subr.mxu0 0.0
  %632 = vmatpush2.msra.mxu0 0.0
  %633 = vmatprep.subr.mxu0 0.0
  %634 = vmatpush2.msra.mxu0 0.0
  %635 = vmatprep.subr.mxu0 0.0
  %636 = vmatpush2.msra.mxu0 0.0
  %637 = vmatprep.mubr.f32.mxu0 0.0
  %638 = vmatmul.mubr.f32.gmra.mxu0 %v444
  %v639 = vpop.f32.mrf.mxu0
  %v640 = vadd.f32 0.0, %v639
  %v641 = vpop.f32.mrf.mxu0
  %642 = vmatprep.mubr.f32.mxu0 0.0
  %643 = vmatmul.mubr.f32.gmra.mxu0 %v445
  %v644 = vpop.f32.mrf.mxu0
  %v645 = vadd.f32 0.0, %v644
  %v646 = vpop.f32.mrf.mxu0
  %647 = vdwg.mxu0
  %v649 = vlaneseq
  %v650 = vshrl.u32 %v649, 7
  %v651 = vsub.s32 0, %v650
  %v652 = vrot.slane %v494, %v651
  %654 = vmatprep.subr.mxu0 0.0
  %655 = vmatpush1.msra.mxu0 %v477
  %656 = vmatprep.subr.mxu0 0.0
  %657 = vmatpush1.msra.mxu0 %v476
  %658 = vmatprep.subr.mxu0 0.0
  %659 = vmatpush1.msra.mxu0 %v475
  %660 = vmatprep.subr.mxu0 0.0
  %661 = vmatpush1.msra.mxu0 %v474
  %662 = vmatprep.subr.mxu0 0.0
  %663 = vmatpush1.msra.mxu0 %v473
  %664 = vmatprep.subr.mxu0 0.0
  %665 = vmatpush1.msra.mxu0 %v472
  %666 = vmatprep.subr.mxu0 0.0
  %667 = vmatpush1.msra.mxu0 %v471
  %668 = vmatprep.subr.mxu0 0.0
  %669 = vmatpush1.msra.mxu0 %v470
  %670 = vmatprep.subr.mxu0 0.0
  %671 = vmatpush1.msra.mxu0 %v469
  %672 = vmatprep.subr.mxu0 0.0
  %673 = vmatpush1.msra.mxu0 %v468
  %674 = vmatprep.subr.mxu0 0.0
  %675 = vmatpush1.msra.mxu0 %v467
  %676 = vmatprep.subr.mxu0 0.0
  %677 = vmatpush1.msra.mxu0 %v466
  %678 = vmatprep.subr.mxu0 0.0
  %679 = vmatpush1.msra.mxu0 %v465
  %680 = vmatprep.subr.mxu0 0.0
  %681 = vmatpush1.msra.mxu0 %v464
  %682 = vmatprep.subr.mxu0 0.0
  %683 = vmatpush1.msra.mxu0 %v463
  %684 = vmatprep.subr.mxu0 0.0
  %685 = vmatpush1.msra.mxu0 %v462
  %686 = vmatprep.subr.mxu0 0.0
  %687 = vmatpush2.msra.mxu0 0.0
  %688 = vmatprep.subr.mxu0 0.0
  %689 = vmatpush2.msra.mxu0 0.0
  %690 = vmatprep.subr.mxu0 0.0
  %691 = vmatpush2.msra.mxu0 0.0
  %692 = vmatprep.subr.mxu0 0.0
  %693 = vmatpush2.msra.mxu0 0.0
  %694 = vmatprep.subr.mxu0 0.0
  %695 = vmatpush2.msra.mxu0 0.0
  %696 = vmatprep.subr.mxu0 0.0
  %697 = vmatpush2.msra.mxu0 0.0
  %698 = vmatprep.subr.mxu0 0.0
  %699 = vmatpush2.msra.mxu0 0.0
  %700 = vmatprep.subr.mxu0 0.0
  %701 = vmatpush2.msra.mxu0 0.0
  %702 = vmatprep.subr.mxu0 0.0
  %703 = vmatpush2.msra.mxu0 0.0
  %704 = vmatprep.subr.mxu0 0.0
  %705 = vmatpush2.msra.mxu0 0.0
  %706 = vmatprep.subr.mxu0 0.0
  %707 = vmatpush2.msra.mxu0 0.0
  %708 = vmatprep.subr.mxu0 0.0
  %709 = vmatpush2.msra.mxu0 0.0
  %710 = vmatprep.subr.mxu0 0.0
  %711 = vmatpush2.msra.mxu0 0.0
  %712 = vmatprep.subr.mxu0 0.0
  %713 = vmatpush2.msra.mxu0 0.0
  %714 = vmatprep.subr.mxu0 0.0
  %715 = vmatpush2.msra.mxu0 0.0
  %716 = vmatprep.subr.mxu0 0.0
  %717 = vmatpush2.msra.mxu0 0.0
  %718 = vmatprep.mubr.f32.mxu0 0.0
  %719 = vmatmul.mubr.f32.gmra.mxu0 %v444
  %v720 = vpop.f32.mrf.mxu0
  %v721 = vadd.f32 %v652, %v720
  %v722 = vpop.f32.mrf.mxu0
  %723 = vmatprep.mubr.f32.mxu0 0.0
  %724 = vmatmul.mubr.f32.gmra.mxu0 %v445
  %v725 = vpop.f32.mrf.mxu0
  %v726 = vadd.f32 %v652, %v725
  %v727 = vpop.f32.mrf.mxu0
  %728 = vdwg.mxu0
  %v731 = vrot.slane %v565, 7
  %v732 = vrot.slane %v570, 7
  %v733 = vsel %vm345, %v731, %v732
  %v736 = vsel %vm345, 0.0, %v731
  %v737 = vadd.f32 %v721, %v736
  %v738 = vadd.f32 %v726, %v733
  %v741 = vrot.slane %v640, 1
  %v742 = vrot.slane %v645, 1
  %v743 = vsel %vm356, %v741, %v742
  %v746 = vsel %vm356, %v742, 0.0
  %v747 = vadd.f32 %v737, %v743
  %v748 = vadd.f32 %v738, %v746
  %v749 = vadd.f32 %v747, %v748
  %v750 = vrot.slane %v749, 4
  %v751 = vadd.f32 %v749, %v750
  %v752 = vrot.slane %v751, 2
  %v753 = vadd.f32 %v751, %v752
  %v754 = vrot.slane %v753, 1
  %v755 = vadd.f32 %v753, %v754
  %v756 = vmul.f32 %v747, %v747
  %v757 = vmul.f32 %v748, %v748
  %v758 = vadd.f32 %v756, %v757
  %v759 = vrot.slane %v758, 4
  %v760 = vadd.f32 %v758, %v759
  %v761 = vrot.slane %v760, 2
  %v762 = vadd.f32 %v760, %v761
  %v763 = vrot.slane %v762, 1
  %v764 = vadd.f32 %v762, %v763
  %765 = vrot.lane.b32.xlu0 %v755, 4
  %v766 = vpop.permute.xlu0 %765
  %v767 = vadd.f32 %v755, %v766
  %768 = vrot.lane.b32.xlu0 %v764, 4
  %v769 = vpop.permute.xlu0 %768
  %v770 = vadd.f32 %v764, %v769
  %771 = vrot.lane.b32.xlu0 %v767, 8
  %v772 = vpop.permute.xlu0 %771
  %v773 = vadd.f32 %v767, %v772
  %774 = vrot.lane.b32.xlu0 %v770, 8
  %v775 = vpop.permute.xlu0 %774
  %v776 = vadd.f32 %v770, %v775
  %777 = vrot.lane.b32.xlu0 %v773, 16
  %v778 = vpop.permute.xlu0 %777
  %v779 = vadd.f32 %v773, %v778
  %780 = vrot.lane.b32.xlu0 %v776, 16
  %v781 = vpop.permute.xlu0 %780
  %v782 = vadd.f32 %v776, %v781
  %783 = vrot.lane.b32.xlu0 %v779, 32
  %v784 = vpop.permute.xlu0 %783
  %v785 = vadd.f32 %v779, %v784
  %786 = vrot.lane.b32.xlu0 %v782, 32
  %v787 = vpop.permute.xlu0 %786
  %v788 = vadd.f32 %v782, %v787
  %789 = vrot.lane.b32.xlu0 %v785, 64
  %v790 = vpop.permute.xlu0 %789
  %v791 = vadd.f32 %v785, %v790
  %792 = vrot.lane.b32.xlu0 %v788, 64
  %v793 = vpop.permute.xlu0 %792
  %v794 = vadd.f32 %v788, %v793
  %v795 = vmul.f32 %v791, 0.001953125
  %v796 = vmul.f32 %v794, 0.001953125
  %v797 = vmul.f32 %v795, %v795
  %v798 = vsub.f32 %v796, %v797
  %v799 = vmax.f32 %v798, 0.0
  %v800 = vadd.f32 %v799, 1e-05
  %v801 = vrsqrt.pop %v800
  %v802 = vlaneseq
  %v803 = vshrl.u32 %v802, 7
  %v804 = vsub.s32 0, %v803
  %v805 = vrot.slane %v795, %v804
  %v806 = vsub.f32 %v747, %v805
  %v807 = vsub.f32 %v748, %v805
  %v808 = vmul.f32 %v801, %v495
  %v809 = vlaneseq
  %v810 = vshrl.u32 %v809, 7
  %v811 = vsub.s32 0, %v810
  %v812 = vrot.slane %v808, %v811
  %v813 = vmul.f32 %v806, %v812
  %v814 = vmul.f32 %v807, %v812
  %v816 = vlaneseq
  %v817 = vshrl.u32 %v816, 7
  %v818 = vsub.s32 0, %v817
  %v819 = vrot.slane %v496, %v818
  %v821 = vadd.f32 %v813, %v819
  %v822 = vadd.f32 %v814, %v819
  %vm823 = vcmp.gt.f32.partialorder %v821, 0.0
  %vm824 = vcmp.gt.f32.partialorder %v822, 0.0
  %v825 = vstv %s497
  %v826 = vmul.f32 %v825, %v821
  %v827 = vmul.f32 %v825, %v822
  %v828 = vsel %vm823, %v821, %v826
  %v829 = vsel %vm824, %v822, %v827
  %v830 = vld [vmem:[%s15] sm:$0xff]
  %v831 = vld [vmem:[%s15 + $0x8] sm:$0xff]
  %v832 = vld [vmem:[%s15 + $0x10] sm:$0xff]
  %v833 = vld [vmem:[%s15 + $0x18] sm:$0xff]
  %v834 = vld [vmem:[%s15 + $0x20] sm:$0xff]
  %v835 = vld [vmem:[%s15 + $0x28] sm:$0xff]
  %v836 = vld [vmem:[%s15 + $0x30] sm:$0xff]
  %v837 = vld [vmem:[%s15 + $0x38] sm:$0xff]
  %v838 = vld [vmem:[%s15 + $0x40] sm:$0xff]
  %v839 = vld [vmem:[%s15 + $0x48] sm:$0xff]
  %v840 = vld [vmem:[%s15 + $0x50] sm:$0xff]
  %v841 = vld [vmem:[%s15 + $0x58] sm:$0xff]
  %v842 = vld [vmem:[%s15 + $0x60] sm:$0xff]
  %v843 = vld [vmem:[%s15 + $0x68] sm:$0xff]
  %v844 = vld [vmem:[%s15 + $0x70] sm:$0xff]
  %v845 = vld [vmem:[%s15 + $0x78] sm:$0xff]
  %v846 = vld [vmem:[%s16] sm:$0x1]
  %v848 = vlaneseq
  %v849 = vshrl.u32 %v848, 7
  %v850 = vsub.s32 0, %v849
  %v851 = vrot.slane %v846, %v850
  %853 = vmatprep.subr.mxu0 0.0
  %854 = vmatpush1.msra.mxu0 %v845
  %855 = vmatprep.subr.mxu0 0.0
  %856 = vmatpush1.msra.mxu0 %v844
  %857 = vmatprep.subr.mxu0 0.0
  %858 = vmatpush1.msra.mxu0 %v843
  %859 = vmatprep.subr.mxu0 0.0
  %860 = vmatpush1.msra.mxu0 %v842
  %861 = vmatprep.subr.mxu0 0.0
  %862 = vmatpush1.msra.mxu0 %v841
  %863 = vmatprep.subr.mxu0 0.0
  %864 = vmatpush1.msra.mxu0 %v840
  %865 = vmatprep.subr.mxu0 0.0
  %866 = vmatpush1.msra.mxu0 %v839
  %867 = vmatprep.subr.mxu0 0.0
  %868 = vmatpush1.msra.mxu0 %v838
  %869 = vmatprep.subr.mxu0 0.0
  %870 = vmatpush1.msra.mxu0 %v837
  %871 = vmatprep.subr.mxu0 0.0
  %872 = vmatpush1.msra.mxu0 %v836
  %873 = vmatprep.subr.mxu0 0.0
  %874 = vmatpush1.msra.mxu0 %v835
  %875 = vmatprep.subr.mxu0 0.0
  %876 = vmatpush1.msra.mxu0 %v834
  %877 = vmatprep.subr.mxu0 0.0
  %878 = vmatpush1.msra.mxu0 %v833
  %879 = vmatprep.subr.mxu0 0.0
  %880 = vmatpush1.msra.mxu0 %v832
  %881 = vmatprep.subr.mxu0 0.0
  %882 = vmatpush1.msra.mxu0 %v831
  %883 = vmatprep.subr.mxu0 0.0
  %884 = vmatpush1.msra.mxu0 %v830
  %885 = vmatprep.subr.mxu0 0.0
  %886 = vmatpush2.msra.mxu0 0.0
  %887 = vmatprep.subr.mxu0 0.0
  %888 = vmatpush2.msra.mxu0 0.0
  %889 = vmatprep.subr.mxu0 0.0
  %890 = vmatpush2.msra.mxu0 0.0
  %891 = vmatprep.subr.mxu0 0.0
  %892 = vmatpush2.msra.mxu0 0.0
  %893 = vmatprep.subr.mxu0 0.0
  %894 = vmatpush2.msra.mxu0 0.0
  %895 = vmatprep.subr.mxu0 0.0
  %896 = vmatpush2.msra.mxu0 0.0
  %897 = vmatprep.subr.mxu0 0.0
  %898 = vmatpush2.msra.mxu0 0.0
  %899 = vmatprep.subr.mxu0 0.0
  %900 = vmatpush2.msra.mxu0 0.0
  %901 = vmatprep.subr.mxu0 0.0
  %902 = vmatpush2.msra.mxu0 0.0
  %903 = vmatprep.subr.mxu0 0.0
  %904 = vmatpush2.msra.mxu0 0.0
  %905 = vmatprep.subr.mxu0 0.0
  %906 = vmatpush2.msra.mxu0 0.0
  %907 = vmatprep.subr.mxu0 0.0
  %908 = vmatpush2.msra.mxu0 0.0
  %909 = vmatprep.subr.mxu0 0.0
  %910 = vmatpush2.msra.mxu0 0.0
  %911 = vmatprep.subr.mxu0 0.0
  %912 = vmatpush2.msra.mxu0 0.0
  %913 = vmatprep.subr.mxu0 0.0
  %914 = vmatpush2.msra.mxu0 0.0
  %915 = vmatprep.subr.mxu0 0.0
  %916 = vmatpush2.msra.mxu0 0.0
  %917 = vmatprep.mubr.f32.mxu0 0.0
  %918 = vmatmul.mubr.f32.gmra.mxu0 %v58
  %v919 = vpop.f32.mrf.mxu0
  %v920 = vadd.f32 %v851, %v919
  %v921 = vpop.f32.mrf.mxu0
  %922 = vmatprep.mubr.f32.mxu0 0.0
  %923 = vmatmul.mubr.f32.gmra.mxu0 %v59
  %v924 = vpop.f32.mrf.mxu0
  %v925 = vadd.f32 %v851, %v924
  %v926 = vpop.f32.mrf.mxu0
  %927 = vdwg.mxu0
  %v928 = vadd.f32 %v920, %v828
  %v929 = vadd.f32 %v925, %v829
  %930 = vst [vmem:[%s17] sm:$0xff] %v928
  %931 = vst [vmem:[%s17 + $0x8] sm:$0xff] %v929
  // Predicated region
  $region70: #{residual_block_forward.1} parent=0 // pred_check
    _
  $region71: #{residual_block_forward.1} parent=0 // pred_check_branch
    %933 = sbr.rel (0) target = $region73
  $region72: #{residual_block_forward.1} parent=0 // pred_region
    _
  $region73: #{residual_block_forward.1} parent=0 // pred_fallthru
    _
  // Predicated region
  $region74: #{residual_block_forward.1} parent=0 // pred_check
    _
  $region75: #{residual_block_forward.1} parent=0 // pred_check_branch
    %935 = sbr.rel (0) target = $region77
  $region76: #{residual_block_forward.1} parent=0 // pred_region
    _
  $region77: #{residual_block_forward.1} parent=0 // pred_fallthru
    _

</llo_original>
